<compile_context>
chip_gen: v7x
topology: tpu7x:2x2x1
jax: 0.10.0
libtpu: 0.0.40
codegen_flags: <defaults>
</compile_context>

<pallas_src>
import functools

import jax
import jax.numpy as jnp
from jax import lax
from jax.experimental import pallas as pl
from jax.experimental.pallas import tpu as pltpu

BN_EPS = 1e-5


# ---------------------------------------------------------------------------
# The fused Pallas kernel (no grid: the whole forward is one invocation)
# ---------------------------------------------------------------------------
def _cmapnn_kernel(x_ref, w_ref, sel_ref, prow_ref, pack_ref, wdb_ref, o_ref,
                   *, batch, layer_dims, w_offsets):
  f32, bf16 = jnp.float32, jnp.bfloat16

  def conv_relu_bn_pool(x, li, h, w, cin, cout):
    bh = batch * h            # images stacked along the row (sublane) axis
    L = w * cout              # conv-output lane width (256 for every layer)

    # ---- 3x3 circular conv as ONE bf16 MXU matmul -------------------------
    # Per-image circular shift along H: a plain roll of the batch-stacked
    # activation is wrong only on each image's first/last row; patch those
    # rows with a second (image-internal) roll and a select.
    rid = lax.broadcasted_iota(jnp.int32, (bh, w * cin), 0)
    x_dn = jnp.where((rid & (h - 1)) == 0,
                     pltpu.roll(x, bh + 1 - h, axis=0),
                     pltpu.roll(x, 1, axis=0))          # x[h-1] within image
    x_up = jnp.where((rid & (h - 1)) == (h - 1),
                     pltpu.roll(x, h - 1, axis=0),
                     pltpu.roll(x, bh - 1, axis=0))     # x[h+1] within image
    taps = jnp.concatenate([x_dn, x, x_up], axis=1).astype(bf16)
    wmat = w_ref[w_offsets[li]:w_offsets[li + 1], :]    # (3*w*cin, L) bf16
    y = jnp.dot(taps, wmat, preferred_element_type=f32)  # (bh, L) f32

    pk = pack_ref[li]                                   # (3, L) f32
    bias_t, gamma_t, beta_t = pk[0:1, :], pk[1:2, :], pk[2:3, :]
    y = jnp.maximum(y + bias_t, 0.0)                    # conv bias + ReLU

    # ---- BatchNorm (training-mode batch statistics), one pass, all f32 ----
    sq = jnp.concatenate([jnp.sum(y, axis=0, keepdims=True),
                          jnp.sum(y * y, axis=0, keepdims=True)], axis=0)
    step = cout
    while step < L:            # per-channel fold + broadcast via lane rolls
      sq = sq + pltpu.roll(sq, step, axis=1)
      step *= 2
    inv_n = 1.0 / float(batch * h * w)
    mean_t = sq[0:1, :] * inv_n
    var_t = jnp.maximum(sq[1:2, :] * inv_n - mean_t * mean_t, 0.0)
    scale_t = gamma_t * lax.rsqrt(var_t + BN_EPS)
    shift_t = beta_t - mean_t * scale_t
    y = y * scale_t + shift_t                           # BN affine

    # ---- fused 2x2 max pool ------------------------------------------------
    # Rows: max(y[r], y[r+1]) then keep even rows (cross-image / wrap rows
    # land only on odd rows and are discarded by the selector).
    rmax = jnp.maximum(y, pltpu.roll(y, bh - 1, axis=0))
    pr = prow_ref[0:bh // 2, 0:bh]                      # shared even-row sel.
    rsel = jnp.dot(pr, rmax.astype(bf16), preferred_element_type=f32)
    # W blocks: max(w, w+1) then keep even w blocks.
    wmax = jnp.maximum(rsel, pltpu.roll(rsel, L - cout, axis=1))
    return jnp.dot(wmax.astype(bf16), sel_ref[li],
                   preferred_element_type=f32)          # (bh//2, L//2) f32

  act = x_ref[...]                                      # (B*H, W) f32, Cin=1
  for li, (h, w, cin, cout) in enumerate(layer_dims):
    act = conv_relu_bn_pool(act, li, h, w, cin, cout)

  # ---- GAP -> Linear -> LogSoftmax, all images at once ---------------------
  hf, wf, c = layer_dims[-1][0] // 2, layer_dims[-1][1] // 2, layer_dims[-1][3]
  colsum = jnp.concatenate(
      [jnp.sum(act[b * hf:(b + 1) * hf, :], axis=0, keepdims=True)
       for b in range(batch)], axis=0)                  # (B, wf*c)
  step = c
  while step < wf * c:                                  # fold w into channels
    colsum = colsum + pltpu.roll(colsum, step, axis=1)
    step *= 2
  gap = colsum[:, 0:c] * (1.0 / float(hf * wf))         # (B, c)
  gaug = jnp.concatenate([gap, jnp.ones((batch, 1), f32)], axis=1)  # (B, c+1)
  logits = jnp.dot(gaug, wdb_ref[...], preferred_element_type=f32)  # (B, nc)
  z = logits - jnp.max(logits, axis=1, keepdims=True)
  o_ref[...] = z - jnp.log(jnp.sum(jnp.exp(z), axis=1, keepdims=True))


# ---------------------------------------------------------------------------
# One-time constant preprocessing (done ONCE per model, not per call)
# ---------------------------------------------------------------------------
def _build_operands(params, batch, height, width):
  f32, bf16 = jnp.float32, jnp.bfloat16
  layer_dims, w_parts, sel_parts, pack_parts = [], [], [], []
  h, w = height, width
  for p in params["conv"]:
    wt = jnp.asarray(p["w"], f32)                       # (3, 3, Cin, Cout)
    cin, cout = wt.shape[2], wt.shape[3]
    eye_w = jnp.eye(w, dtype=f32)
    rows = []
    for i in range(3):                                  # kernel H tap
      acc = jnp.zeros((w * cin, w * cout), f32)
      for j in range(3):                                # circular W taps
        blk = jnp.kron(eye_w, wt[i, j])                 # block-diag (Cin,Cout)
        acc = acc + jnp.roll(blk, (j - 1) * cin, axis=0)
      rows.append(acc)
    w_parts.append(jnp.concatenate(rows, axis=0))       # (3*w*cin, w*cout)
    sel_parts.append(jnp.kron(eye_w[:, 0::2], jnp.eye(cout, dtype=f32)))
    pack_parts.append(jnp.stack([jnp.tile(jnp.asarray(p["b"], f32), w),
                                 jnp.tile(jnp.asarray(p["gamma"], f32), w),
                                 jnp.tile(jnp.asarray(p["beta"], f32), w)]))
    layer_dims.append((h, w, cin, cout))
    h, w = h // 2, w // 2

  w_offsets = [0]
  for wp in w_parts:
    w_offsets.append(w_offsets[-1] + wp.shape[0])

  return dict(
      wcat=jnp.concatenate(w_parts, axis=0).astype(bf16),   # (816, 256) bf16
      sel=jnp.stack(sel_parts).astype(bf16),                # (3, 256, 128)
      prow=jnp.eye(batch * height, dtype=f32)[0::2].astype(bf16),  # (16, 32)
      pack=jnp.stack(pack_parts),                           # (3, 3, 256) f32
      wdb=jnp.concatenate(
          [jnp.asarray(params["dense"]["w"], f32),
           jnp.asarray(params["dense"]["b"], f32).reshape(1, -1)], axis=0),
      layer_dims=tuple(layer_dims),
      w_offsets=tuple(int(o) for o in w_offsets),
  )


def make_cmapnn_forward(params, batch, height, width):
  """Builds constants once and returns a jitted forward(x_nchw) -> log-probs."""
  ops = _build_operands(params, batch, height, width)
  wcat, sel, prow, pack, wdb = (ops["wcat"], ops["sel"], ops["prow"],
                                ops["pack"], ops["wdb"])
  num_classes = wdb.shape[1]
  kernel = functools.partial(_cmapnn_kernel, batch=batch,
                             layer_dims=ops["layer_dims"],
                             w_offsets=ops["w_offsets"])

  @jax.jit
  def forward(x_nchw):
    # (B, 1, H, W) -> batch-stacked rows (B*H, W); the only per-call prep.
    x = x_nchw.astype(jnp.float32)[:, 0, :, :].reshape(batch * height, width)
    return pl.pallas_call(
        kernel,
        out_shape=jax.ShapeDtypeStruct((batch, num_classes), jnp.float32),
        in_specs=[pl.BlockSpec(memory_space=pltpu.MemorySpace.VMEM)] * 6,
        out_specs=pl.BlockSpec(memory_space=pltpu.MemorySpace.VMEM),
    )(x, wcat, sel, prow, pack, wdb)

  return forward


# ---------------------------------------------------------------------------
# Deterministic parameters (shapes from CMapNN.__init__, kernel_size=3)
# ---------------------------------------------------------------------------
def init_params(key, num_classes=4):
  ks = jax.random.split(key, 8)

  def conv(kw, kb, cin, cout):
    bound = 1.0 / (9 * cin) ** 0.5
    return dict(
        w=jax.random.uniform(kw, (3, 3, cin, cout), jnp.float32, -bound, bound),
        b=jax.random.uniform(kb, (cout,), jnp.float32, -bound, bound),
        gamma=jnp.ones((cout,), jnp.float32),       # nn.BatchNorm2d defaults
        beta=jnp.zeros((cout,), jnp.float32),
    )

  dbound = 1.0 / 64.0 ** 0.5
  return {
      "conv": [conv(ks[0], ks[1], 1, 16),
               conv(ks[2], ks[3], 16, 32),
               conv(ks[4], ks[5], 32, 64)],
      "dense": dict(
          w=jax.random.uniform(ks[6], (64, num_classes), jnp.float32,
                               -dbound, dbound),
          b=jax.random.uniform(ks[7], (1, num_classes), jnp.float32,
                               -dbound, dbound)),
  }


# ---------------------------------------------------------------------------
# Pure-JAX reference of the same forward (for numerical verification only)
# ---------------------------------------------------------------------------
def reference_forward(x_nchw, params):
  x = jnp.transpose(x_nchw, (0, 2, 3, 1)).astype(jnp.float32)      # NHWC
  for p in params["conv"]:
    xp = jnp.pad(x, ((0, 0), (1, 1), (1, 1), (0, 0)), mode="wrap")  # circular
    y = lax.conv_general_dilated(
        xp.astype(jnp.bfloat16), p["w"].astype(jnp.bfloat16),
        window_strides=(1, 1), padding="VALID",
        dimension_numbers=("NHWC", "HWIO", "NHWC"),
        preferred_element_type=jnp.float32)
    y = jnp.maximum(y + p["b"], 0.0)                                # bias+ReLU
    mean = jnp.mean(y, axis=(0, 1, 2))
    var = jnp.mean(jnp.square(y - mean), axis=(0, 1, 2))            # biased
    y = (y - mean) * lax.rsqrt(var + BN_EPS) * p["gamma"] + p["beta"]
    b, h, w, c = y.shape
    x = y.reshape(b, h // 2, 2, w // 2, 2, c).max(axis=(2, 4))      # MaxPool
  feat = jnp.mean(x.reshape(x.shape[0], -1, x.shape[-1]), axis=1)   # GAP
  logits = feat @ params["dense"]["w"] + params["dense"]["b"]
  return jax.nn.log_softmax(logits, axis=-1)


if __name__ == "__main__":
  key = jax.random.PRNGKey(0)
  k_x, k_p = jax.random.split(key)

  B, H, W, num_classes = 2, 16, 16, 4
  x = jax.random.normal(k_x, (B, 1, H, W), jnp.float32)   # NCHW, like PyTorch
  params = init_params(k_p, num_classes=num_classes)

  forward = make_cmapnn_forward(params, B, H, W)   # constants built ONCE here
  log_probs = forward(x)
  jax.block_until_ready(log_probs)

  assert log_probs.shape == (B, num_classes)
  assert bool(jnp.all(jnp.isfinite(log_probs)))
  # rows of exp(log_probs) must sum to 1 (LogSoftmax)
  assert bool(jnp.allclose(jnp.sum(jnp.exp(log_probs), axis=1), 1.0, atol=1e-4))

  # Cross-check against a pure-JAX reference (bf16 convs, f32 elsewhere).
  ref = reference_forward(x, params)
  assert bool(jnp.allclose(log_probs, ref, atol=5e-2, rtol=5e-2)), (
      f"max|diff|={float(jnp.max(jnp.abs(log_probs - ref)))}")

  print("KERNEL_OK")
</pallas_src>

<mosaic_0001>
module attributes {stable_mosaic.version = 11 : i64} {
  func.func @_cmapnn_kernel(%arg0: memref<32x16xf32, #tpu.memory_space<vmem>>, %arg1: memref<816x256xbf16, #tpu.memory_space<vmem>>, %arg2: memref<3x256x128xbf16, #tpu.memory_space<vmem>>, %arg3: memref<16x32xbf16, #tpu.memory_space<vmem>>, %arg4: memref<3x3x256xf32, #tpu.memory_space<vmem>>, %arg5: memref<65x4xf32, #tpu.memory_space<vmem>>, %arg6: memref<2x4xf32, #tpu.memory_space<vmem>>) attributes {dimension_semantics = [], scalar_prefetch = 0 : i64, scratch_operands = 0 : i64, tpu.core_type = #tpu.core_type<tc>} {
    %c0 = arith.constant 0 : index
    %c0_0 = arith.constant 0 : index
    %0 = vector.load %arg0[%c0, %c0_0] : memref<32x16xf32, #tpu.memory_space<vmem>>, vector<32x16xf32>
    %1 = tpu.iota {dimensions = array<i32: 0>} : vector<32x16xi32>
    %c15_i32 = arith.constant 15 : i32
    %2 = vector.broadcast %c15_i32 : i32 to vector<32x16xi32>
    %3 = arith.andi %1, %2 : vector<32x16xi32>
    %c0_i32 = arith.constant 0 : i32
    %4 = vector.broadcast %c0_i32 : i32 to vector<32x16xi32>
    %5 = arith.cmpi eq, %3, %4 : vector<32x16xi32>
    %c17_i32 = arith.constant 17 : i32
    %6 = tpu.dynamic_rotate %0 by %c17_i32 dim 0 : vector<32x16xf32>, i32 -> vector<32x16xf32>
    %c1_i32 = arith.constant 1 : i32
    %7 = tpu.dynamic_rotate %0 by %c1_i32 dim 0 : vector<32x16xf32>, i32 -> vector<32x16xf32>
    %8 = arith.select %5, %6, %7 : vector<32x16xi1>, vector<32x16xf32>
    %c15_i32_1 = arith.constant 15 : i32
    %9 = vector.broadcast %c15_i32_1 : i32 to vector<32x16xi32>
    %10 = arith.andi %1, %9 : vector<32x16xi32>
    %c15_i32_2 = arith.constant 15 : i32
    %11 = vector.broadcast %c15_i32_2 : i32 to vector<32x16xi32>
    %12 = arith.cmpi eq, %10, %11 : vector<32x16xi32>
    %c15_i32_3 = arith.constant 15 : i32
    %13 = tpu.dynamic_rotate %0 by %c15_i32_3 dim 0 : vector<32x16xf32>, i32 -> vector<32x16xf32>
    %c31_i32 = arith.constant 31 : i32
    %14 = tpu.dynamic_rotate %0 by %c31_i32 dim 0 : vector<32x16xf32>, i32 -> vector<32x16xf32>
    %15 = arith.select %12, %13, %14 : vector<32x16xi1>, vector<32x16xf32>
    %16 = tpu.concatenate %8, %0, %15 in 1 : vector<32x16xf32>, vector<32x16xf32>, vector<32x16xf32> -> vector<32x48xf32>
    %17 = arith.truncf %16 : vector<32x48xf32> to vector<32x48xbf16>
    %c0_4 = arith.constant 0 : index
    %c0_5 = arith.constant 0 : index
    %18 = vector.load %arg1[%c0_4, %c0_5] : memref<816x256xbf16, #tpu.memory_space<vmem>>, vector<48x256xbf16>
    %cst = arith.constant dense<0.000000e+00> : vector<32x256xf32>
    %19 = tpu.matmul %17, %18, %cst {dimension_numbers = #tpu.dot_dimension_numbers<[1], [0], [0], [1], [0, 0, 1, 1], [], []>} : vector<32x48xbf16>, vector<48x256xbf16>, vector<32x256xf32> -> vector<32x256xf32>
    %c0_6 = arith.constant 0 : index
    %c0_7 = arith.constant 0 : index
    %c0_8 = arith.constant 0 : index
    %20 = vector.load %arg4[%c0_6, %c0_7, %c0_8] : memref<3x3x256xf32, #tpu.memory_space<vmem>>, vector<1x3x256xf32>
    %21 = vector.shape_cast %20 : vector<1x3x256xf32> to vector<3x256xf32>
    %22 = vector.extract_strided_slice %21 {offsets = [0, 0], sizes = [1, 256], strides = [1, 1]} : vector<3x256xf32> to vector<1x256xf32>
    %23 = vector.extract_strided_slice %21 {offsets = [1, 0], sizes = [1, 256], strides = [1, 1]} : vector<3x256xf32> to vector<1x256xf32>
    %24 = vector.extract_strided_slice %21 {offsets = [2, 0], sizes = [1, 256], strides = [1, 1]} : vector<3x256xf32> to vector<1x256xf32>
    %25 = vector.broadcast %22 : vector<1x256xf32> to vector<32x256xf32>
    %26 = arith.addf %19, %25 : vector<32x256xf32>
    %cst_9 = arith.constant 0.000000e+00 : f32
    %27 = vector.broadcast %cst_9 : f32 to vector<32x256xf32>
    %28 = arith.maximumf %26, %27 : vector<32x256xf32>
    %cst_10 = arith.constant dense<0.000000e+00> : vector<256xf32>
    %29 = vector.multi_reduction <add>, %28, %cst_10 [0] : vector<32x256xf32> to vector<256xf32>
    %30 = vector.shape_cast %29 : vector<256xf32> to vector<1x256xf32>
    %31 = arith.mulf %28, %28 : vector<32x256xf32>
    %cst_11 = arith.constant dense<0.000000e+00> : vector<256xf32>
    %32 = vector.multi_reduction <add>, %31, %cst_11 [0] : vector<32x256xf32> to vector<256xf32>
    %33 = vector.shape_cast %32 : vector<256xf32> to vector<1x256xf32>
    %34 = tpu.concatenate %30, %33 in 0 : vector<1x256xf32>, vector<1x256xf32> -> vector<2x256xf32>
    %c16_i32 = arith.constant 16 : i32
    %35 = tpu.dynamic_rotate %34 by %c16_i32 dim 1 : vector<2x256xf32>, i32 -> vector<2x256xf32>
    %36 = arith.addf %34, %35 : vector<2x256xf32>
    %c32_i32 = arith.constant 32 : i32
    %37 = tpu.dynamic_rotate %36 by %c32_i32 dim 1 : vector<2x256xf32>, i32 -> vector<2x256xf32>
    %38 = arith.addf %36, %37 : vector<2x256xf32>
    %c64_i32 = arith.constant 64 : i32
    %39 = tpu.dynamic_rotate %38 by %c64_i32 dim 1 : vector<2x256xf32>, i32 -> vector<2x256xf32>
    %40 = arith.addf %38, %39 : vector<2x256xf32>
    %c128_i32 = arith.constant 128 : i32
    %41 = tpu.dynamic_rotate %40 by %c128_i32 dim 1 : vector<2x256xf32>, i32 -> vector<2x256xf32>
    %42 = arith.addf %40, %41 : vector<2x256xf32>
    %43 = vector.extract_strided_slice %42 {offsets = [0, 0], sizes = [1, 256], strides = [1, 1]} : vector<2x256xf32> to vector<1x256xf32>
    %cst_12 = arith.constant 0.001953125 : f32
    %44 = vector.broadcast %cst_12 : f32 to vector<1x256xf32>
    %45 = arith.mulf %43, %44 : vector<1x256xf32>
    %46 = vector.extract_strided_slice %42 {offsets = [1, 0], sizes = [1, 256], strides = [1, 1]} : vector<2x256xf32> to vector<1x256xf32>
    %cst_13 = arith.constant 0.001953125 : f32
    %47 = vector.broadcast %cst_13 : f32 to vector<1x256xf32>
    %48 = arith.mulf %46, %47 : vector<1x256xf32>
    %49 = arith.mulf %45, %45 : vector<1x256xf32>
    %50 = arith.subf %48, %49 : vector<1x256xf32>
    %cst_14 = arith.constant 0.000000e+00 : f32
    %51 = vector.broadcast %cst_14 : f32 to vector<1x256xf32>
    %52 = arith.maximumf %50, %51 : vector<1x256xf32>
    %cst_15 = arith.constant 9.99999974E-6 : f32
    %53 = vector.broadcast %cst_15 : f32 to vector<1x256xf32>
    %54 = arith.addf %52, %53 : vector<1x256xf32>
    %55 = math.rsqrt %54 : vector<1x256xf32>
    %56 = arith.mulf %23, %55 : vector<1x256xf32>
    %57 = arith.mulf %45, %56 : vector<1x256xf32>
    %58 = arith.subf %24, %57 : vector<1x256xf32>
    %59 = vector.broadcast %56 : vector<1x256xf32> to vector<32x256xf32>
    %60 = arith.mulf %28, %59 : vector<32x256xf32>
    %61 = vector.broadcast %58 : vector<1x256xf32> to vector<32x256xf32>
    %62 = arith.addf %60, %61 : vector<32x256xf32>
    %c31_i32_16 = arith.constant 31 : i32
    %63 = tpu.dynamic_rotate %62 by %c31_i32_16 dim 0 : vector<32x256xf32>, i32 -> vector<32x256xf32>
    %64 = arith.maximumf %62, %63 : vector<32x256xf32>
    %c0_17 = arith.constant 0 : index
    %c0_18 = arith.constant 0 : index
    %65 = vector.load %arg3[%c0_17, %c0_18] : memref<16x32xbf16, #tpu.memory_space<vmem>>, vector<16x32xbf16>
    %66 = arith.truncf %64 : vector<32x256xf32> to vector<32x256xbf16>
    %cst_19 = arith.constant dense<0.000000e+00> : vector<16x256xf32>
    %67 = tpu.matmul %65, %66, %cst_19 {dimension_numbers = #tpu.dot_dimension_numbers<[1], [0], [0], [1], [0, 0, 1, 1], [], []>} : vector<16x32xbf16>, vector<32x256xbf16>, vector<16x256xf32> -> vector<16x256xf32>
    %c240_i32 = arith.constant 240 : i32
    %68 = tpu.dynamic_rotate %67 by %c240_i32 dim 1 : vector<16x256xf32>, i32 -> vector<16x256xf32>
    %69 = arith.maximumf %67, %68 : vector<16x256xf32>
    %70 = arith.truncf %69 : vector<16x256xf32> to vector<16x256xbf16>
    %c0_20 = arith.constant 0 : index
    %c0_21 = arith.constant 0 : index
    %c0_22 = arith.constant 0 : index
    %71 = vector.load %arg2[%c0_20, %c0_21, %c0_22] : memref<3x256x128xbf16, #tpu.memory_space<vmem>>, vector<1x256x128xbf16>
    %72 = vector.shape_cast %71 : vector<1x256x128xbf16> to vector<256x128xbf16>
    %cst_23 = arith.constant dense<0.000000e+00> : vector<16x128xf32>
    %73 = tpu.matmul %70, %72, %cst_23 {dimension_numbers = #tpu.dot_dimension_numbers<[1], [0], [0], [1], [0, 0, 1, 1], [], []>} : vector<16x256xbf16>, vector<256x128xbf16>, vector<16x128xf32> -> vector<16x128xf32>
    %74 = tpu.iota {dimensions = array<i32: 0>} : vector<16x128xi32>
    %c7_i32 = arith.constant 7 : i32
    %75 = vector.broadcast %c7_i32 : i32 to vector<16x128xi32>
    %76 = arith.andi %74, %75 : vector<16x128xi32>
    %c0_i32_24 = arith.constant 0 : i32
    %77 = vector.broadcast %c0_i32_24 : i32 to vector<16x128xi32>
    %78 = arith.cmpi eq, %76, %77 : vector<16x128xi32>
    %c9_i32 = arith.constant 9 : i32
    %79 = tpu.dynamic_rotate %73 by %c9_i32 dim 0 : vector<16x128xf32>, i32 -> vector<16x128xf32>
    %c1_i32_25 = arith.constant 1 : i32
    %80 = tpu.dynamic_rotate %73 by %c1_i32_25 dim 0 : vector<16x128xf32>, i32 -> vector<16x128xf32>
    %81 = arith.select %78, %79, %80 : vector<16x128xi1>, vector<16x128xf32>
    %c7_i32_26 = arith.constant 7 : i32
    %82 = vector.broadcast %c7_i32_26 : i32 to vector<16x128xi32>
    %83 = arith.andi %74, %82 : vector<16x128xi32>
    %c7_i32_27 = arith.constant 7 : i32
    %84 = vector.broadcast %c7_i32_27 : i32 to vector<16x128xi32>
    %85 = arith.cmpi eq, %83, %84 : vector<16x128xi32>
    %c7_i32_28 = arith.constant 7 : i32
    %86 = tpu.dynamic_rotate %73 by %c7_i32_28 dim 0 : vector<16x128xf32>, i32 -> vector<16x128xf32>
    %c15_i32_29 = arith.constant 15 : i32
    %87 = tpu.dynamic_rotate %73 by %c15_i32_29 dim 0 : vector<16x128xf32>, i32 -> vector<16x128xf32>
    %88 = arith.select %85, %86, %87 : vector<16x128xi1>, vector<16x128xf32>
    %89 = tpu.concatenate %81, %73, %88 in 1 : vector<16x128xf32>, vector<16x128xf32>, vector<16x128xf32> -> vector<16x384xf32>
    %90 = arith.truncf %89 : vector<16x384xf32> to vector<16x384xbf16>
    %c48 = arith.constant 48 : index
    %c0_30 = arith.constant 0 : index
    %91 = vector.load %arg1[%c48, %c0_30] : memref<816x256xbf16, #tpu.memory_space<vmem>>, vector<384x256xbf16>
    %cst_31 = arith.constant dense<0.000000e+00> : vector<16x256xf32>
    %92 = tpu.matmul %90, %91, %cst_31 {dimension_numbers = #tpu.dot_dimension_numbers<[1], [0], [0], [1], [0, 0, 1, 1], [], []>} : vector<16x384xbf16>, vector<384x256xbf16>, vector<16x256xf32> -> vector<16x256xf32>
    %c1 = arith.constant 1 : index
    %c0_32 = arith.constant 0 : index
    %c0_33 = arith.constant 0 : index
    %93 = vector.load %arg4[%c1, %c0_32, %c0_33] : memref<3x3x256xf32, #tpu.memory_space<vmem>>, vector<1x3x256xf32>
    %94 = vector.shape_cast %93 : vector<1x3x256xf32> to vector<3x256xf32>
    %95 = vector.extract_strided_slice %94 {offsets = [0, 0], sizes = [1, 256], strides = [1, 1]} : vector<3x256xf32> to vector<1x256xf32>
    %96 = vector.extract_strided_slice %94 {offsets = [1, 0], sizes = [1, 256], strides = [1, 1]} : vector<3x256xf32> to vector<1x256xf32>
    %97 = vector.extract_strided_slice %94 {offsets = [2, 0], sizes = [1, 256], strides = [1, 1]} : vector<3x256xf32> to vector<1x256xf32>
    %98 = vector.broadcast %95 : vector<1x256xf32> to vector<16x256xf32>
    %99 = arith.addf %92, %98 : vector<16x256xf32>
    %cst_34 = arith.constant 0.000000e+00 : f32
    %100 = vector.broadcast %cst_34 : f32 to vector<16x256xf32>
    %101 = arith.maximumf %99, %100 : vector<16x256xf32>
    %cst_35 = arith.constant dense<0.000000e+00> : vector<256xf32>
    %102 = vector.multi_reduction <add>, %101, %cst_35 [0] : vector<16x256xf32> to vector<256xf32>
    %103 = vector.shape_cast %102 : vector<256xf32> to vector<1x256xf32>
    %104 = arith.mulf %101, %101 : vector<16x256xf32>
    %cst_36 = arith.constant dense<0.000000e+00> : vector<256xf32>
    %105 = vector.multi_reduction <add>, %104, %cst_36 [0] : vector<16x256xf32> to vector<256xf32>
    %106 = vector.shape_cast %105 : vector<256xf32> to vector<1x256xf32>
    %107 = tpu.concatenate %103, %106 in 0 : vector<1x256xf32>, vector<1x256xf32> -> vector<2x256xf32>
    %c32_i32_37 = arith.constant 32 : i32
    %108 = tpu.dynamic_rotate %107 by %c32_i32_37 dim 1 : vector<2x256xf32>, i32 -> vector<2x256xf32>
    %109 = arith.addf %107, %108 : vector<2x256xf32>
    %c64_i32_38 = arith.constant 64 : i32
    %110 = tpu.dynamic_rotate %109 by %c64_i32_38 dim 1 : vector<2x256xf32>, i32 -> vector<2x256xf32>
    %111 = arith.addf %109, %110 : vector<2x256xf32>
    %c128_i32_39 = arith.constant 128 : i32
    %112 = tpu.dynamic_rotate %111 by %c128_i32_39 dim 1 : vector<2x256xf32>, i32 -> vector<2x256xf32>
    %113 = arith.addf %111, %112 : vector<2x256xf32>
    %114 = vector.extract_strided_slice %113 {offsets = [0, 0], sizes = [1, 256], strides = [1, 1]} : vector<2x256xf32> to vector<1x256xf32>
    %cst_40 = arith.constant 7.812500e-03 : f32
    %115 = vector.broadcast %cst_40 : f32 to vector<1x256xf32>
    %116 = arith.mulf %114, %115 : vector<1x256xf32>
    %117 = vector.extract_strided_slice %113 {offsets = [1, 0], sizes = [1, 256], strides = [1, 1]} : vector<2x256xf32> to vector<1x256xf32>
    %cst_41 = arith.constant 7.812500e-03 : f32
    %118 = vector.broadcast %cst_41 : f32 to vector<1x256xf32>
    %119 = arith.mulf %117, %118 : vector<1x256xf32>
    %120 = arith.mulf %116, %116 : vector<1x256xf32>
    %121 = arith.subf %119, %120 : vector<1x256xf32>
    %cst_42 = arith.constant 0.000000e+00 : f32
    %122 = vector.broadcast %cst_42 : f32 to vector<1x256xf32>
    %123 = arith.maximumf %121, %122 : vector<1x256xf32>
    %cst_43 = arith.constant 9.99999974E-6 : f32
    %124 = vector.broadcast %cst_43 : f32 to vector<1x256xf32>
    %125 = arith.addf %123, %124 : vector<1x256xf32>
    %126 = math.rsqrt %125 : vector<1x256xf32>
    %127 = arith.mulf %96, %126 : vector<1x256xf32>
    %128 = arith.mulf %116, %127 : vector<1x256xf32>
    %129 = arith.subf %97, %128 : vector<1x256xf32>
    %130 = vector.broadcast %127 : vector<1x256xf32> to vector<16x256xf32>
    %131 = arith.mulf %101, %130 : vector<16x256xf32>
    %132 = vector.broadcast %129 : vector<1x256xf32> to vector<16x256xf32>
    %133 = arith.addf %131, %132 : vector<16x256xf32>
    %c15_i32_44 = arith.constant 15 : i32
    %134 = tpu.dynamic_rotate %133 by %c15_i32_44 dim 0 : vector<16x256xf32>, i32 -> vector<16x256xf32>
    %135 = arith.maximumf %133, %134 : vector<16x256xf32>
    %c0_45 = arith.constant 0 : index
    %c0_46 = arith.constant 0 : index
    %136 = vector.load %arg3[%c0_45, %c0_46] : memref<16x32xbf16, #tpu.memory_space<vmem>>, vector<8x16xbf16>
    %137 = arith.truncf %135 : vector<16x256xf32> to vector<16x256xbf16>
    %cst_47 = arith.constant dense<0.000000e+00> : vector<8x256xf32>
    %138 = tpu.matmul %136, %137, %cst_47 {dimension_numbers = #tpu.dot_dimension_numbers<[1], [0], [0], [1], [0, 0, 1, 1], [], []>} : vector<8x16xbf16>, vector<16x256xbf16>, vector<8x256xf32> -> vector<8x256xf32>
    %c224_i32 = arith.constant 224 : i32
    %139 = tpu.dynamic_rotate %138 by %c224_i32 dim 1 : vector<8x256xf32>, i32 -> vector<8x256xf32>
    %140 = arith.maximumf %138, %139 : vector<8x256xf32>
    %141 = arith.truncf %140 : vector<8x256xf32> to vector<8x256xbf16>
    %c1_48 = arith.constant 1 : index
    %c0_49 = arith.constant 0 : index
    %c0_50 = arith.constant 0 : index
    %142 = vector.load %arg2[%c1_48, %c0_49, %c0_50] : memref<3x256x128xbf16, #tpu.memory_space<vmem>>, vector<1x256x128xbf16>
    %143 = vector.shape_cast %142 : vector<1x256x128xbf16> to vector<256x128xbf16>
    %cst_51 = arith.constant dense<0.000000e+00> : vector<8x128xf32>
    %144 = tpu.matmul %141, %143, %cst_51 {dimension_numbers = #tpu.dot_dimension_numbers<[1], [0], [0], [1], [0, 0, 1, 1], [], []>} : vector<8x256xbf16>, vector<256x128xbf16>, vector<8x128xf32> -> vector<8x128xf32>
    %145 = tpu.iota {dimensions = array<i32: 0>} : vector<8x128xi32>
    %c3_i32 = arith.constant 3 : i32
    %146 = vector.broadcast %c3_i32 : i32 to vector<8x128xi32>
    %147 = arith.andi %145, %146 : vector<8x128xi32>
    %c0_i32_52 = arith.constant 0 : i32
    %148 = vector.broadcast %c0_i32_52 : i32 to vector<8x128xi32>
    %149 = arith.cmpi eq, %147, %148 : vector<8x128xi32>
    %c5_i32 = arith.constant 5 : i32
    %150 = tpu.dynamic_rotate %144 by %c5_i32 dim 0 : vector<8x128xf32>, i32 -> vector<8x128xf32>
    %c1_i32_53 = arith.constant 1 : i32
    %151 = tpu.dynamic_rotate %144 by %c1_i32_53 dim 0 : vector<8x128xf32>, i32 -> vector<8x128xf32>
    %152 = arith.select %149, %150, %151 : vector<8x128xi1>, vector<8x128xf32>
    %c3_i32_54 = arith.constant 3 : i32
    %153 = vector.broadcast %c3_i32_54 : i32 to vector<8x128xi32>
    %154 = arith.andi %145, %153 : vector<8x128xi32>
    %c3_i32_55 = arith.constant 3 : i32
    %155 = vector.broadcast %c3_i32_55 : i32 to vector<8x128xi32>
    %156 = arith.cmpi eq, %154, %155 : vector<8x128xi32>
    %c3_i32_56 = arith.constant 3 : i32
    %157 = tpu.dynamic_rotate %144 by %c3_i32_56 dim 0 : vector<8x128xf32>, i32 -> vector<8x128xf32>
    %c7_i32_57 = arith.constant 7 : i32
    %158 = tpu.dynamic_rotate %144 by %c7_i32_57 dim 0 : vector<8x128xf32>, i32 -> vector<8x128xf32>
    %159 = arith.select %156, %157, %158 : vector<8x128xi1>, vector<8x128xf32>
    %160 = tpu.concatenate %152, %144, %159 in 1 : vector<8x128xf32>, vector<8x128xf32>, vector<8x128xf32> -> vector<8x384xf32>
    %161 = arith.truncf %160 : vector<8x384xf32> to vector<8x384xbf16>
    %c432 = arith.constant 432 : index
    %c0_58 = arith.constant 0 : index
    %162 = vector.load %arg1[%c432, %c0_58] : memref<816x256xbf16, #tpu.memory_space<vmem>>, vector<384x256xbf16>
    %cst_59 = arith.constant dense<0.000000e+00> : vector<8x256xf32>
    %163 = tpu.matmul %161, %162, %cst_59 {dimension_numbers = #tpu.dot_dimension_numbers<[1], [0], [0], [1], [0, 0, 1, 1], [], []>} : vector<8x384xbf16>, vector<384x256xbf16>, vector<8x256xf32> -> vector<8x256xf32>
    %c2 = arith.constant 2 : index
    %c0_60 = arith.constant 0 : index
    %c0_61 = arith.constant 0 : index
    %164 = vector.load %arg4[%c2, %c0_60, %c0_61] : memref<3x3x256xf32, #tpu.memory_space<vmem>>, vector<1x3x256xf32>
    %165 = vector.shape_cast %164 : vector<1x3x256xf32> to vector<3x256xf32>
    %166 = vector.extract_strided_slice %165 {offsets = [0, 0], sizes = [1, 256], strides = [1, 1]} : vector<3x256xf32> to vector<1x256xf32>
    %167 = vector.extract_strided_slice %165 {offsets = [1, 0], sizes = [1, 256], strides = [1, 1]} : vector<3x256xf32> to vector<1x256xf32>
    %168 = vector.extract_strided_slice %165 {offsets = [2, 0], sizes = [1, 256], strides = [1, 1]} : vector<3x256xf32> to vector<1x256xf32>
    %169 = vector.broadcast %166 : vector<1x256xf32> to vector<8x256xf32>
    %170 = arith.addf %163, %169 : vector<8x256xf32>
    %cst_62 = arith.constant 0.000000e+00 : f32
    %171 = vector.broadcast %cst_62 : f32 to vector<8x256xf32>
    %172 = arith.maximumf %170, %171 : vector<8x256xf32>
    %cst_63 = arith.constant dense<0.000000e+00> : vector<256xf32>
    %173 = vector.multi_reduction <add>, %172, %cst_63 [0] : vector<8x256xf32> to vector<256xf32>
    %174 = vector.shape_cast %173 : vector<256xf32> to vector<1x256xf32>
    %175 = arith.mulf %172, %172 : vector<8x256xf32>
    %cst_64 = arith.constant dense<0.000000e+00> : vector<256xf32>
    %176 = vector.multi_reduction <add>, %175, %cst_64 [0] : vector<8x256xf32> to vector<256xf32>
    %177 = vector.shape_cast %176 : vector<256xf32> to vector<1x256xf32>
    %178 = tpu.concatenate %174, %177 in 0 : vector<1x256xf32>, vector<1x256xf32> -> vector<2x256xf32>
    %c64_i32_65 = arith.constant 64 : i32
    %179 = tpu.dynamic_rotate %178 by %c64_i32_65 dim 1 : vector<2x256xf32>, i32 -> vector<2x256xf32>
    %180 = arith.addf %178, %179 : vector<2x256xf32>
    %c128_i32_66 = arith.constant 128 : i32
    %181 = tpu.dynamic_rotate %180 by %c128_i32_66 dim 1 : vector<2x256xf32>, i32 -> vector<2x256xf32>
    %182 = arith.addf %180, %181 : vector<2x256xf32>
    %183 = vector.extract_strided_slice %182 {offsets = [0, 0], sizes = [1, 256], strides = [1, 1]} : vector<2x256xf32> to vector<1x256xf32>
    %cst_67 = arith.constant 3.125000e-02 : f32
    %184 = vector.broadcast %cst_67 : f32 to vector<1x256xf32>
    %185 = arith.mulf %183, %184 : vector<1x256xf32>
    %186 = vector.extract_strided_slice %182 {offsets = [1, 0], sizes = [1, 256], strides = [1, 1]} : vector<2x256xf32> to vector<1x256xf32>
    %cst_68 = arith.constant 3.125000e-02 : f32
    %187 = vector.broadcast %cst_68 : f32 to vector<1x256xf32>
    %188 = arith.mulf %186, %187 : vector<1x256xf32>
    %189 = arith.mulf %185, %185 : vector<1x256xf32>
    %190 = arith.subf %188, %189 : vector<1x256xf32>
    %cst_69 = arith.constant 0.000000e+00 : f32
    %191 = vector.broadcast %cst_69 : f32 to vector<1x256xf32>
    %192 = arith.maximumf %190, %191 : vector<1x256xf32>
    %cst_70 = arith.constant 9.99999974E-6 : f32
    %193 = vector.broadcast %cst_70 : f32 to vector<1x256xf32>
    %194 = arith.addf %192, %193 : vector<1x256xf32>
    %195 = math.rsqrt %194 : vector<1x256xf32>
    %196 = arith.mulf %167, %195 : vector<1x256xf32>
    %197 = arith.mulf %185, %196 : vector<1x256xf32>
    %198 = arith.subf %168, %197 : vector<1x256xf32>
    %199 = vector.broadcast %196 : vector<1x256xf32> to vector<8x256xf32>
    %200 = arith.mulf %172, %199 : vector<8x256xf32>
    %201 = vector.broadcast %198 : vector<1x256xf32> to vector<8x256xf32>
    %202 = arith.addf %200, %201 : vector<8x256xf32>
    %c7_i32_71 = arith.constant 7 : i32
    %203 = tpu.dynamic_rotate %202 by %c7_i32_71 dim 0 : vector<8x256xf32>, i32 -> vector<8x256xf32>
    %204 = arith.maximumf %202, %203 : vector<8x256xf32>
    %c0_72 = arith.constant 0 : index
    %c0_73 = arith.constant 0 : index
    %205 = vector.load %arg3[%c0_72, %c0_73] : memref<16x32xbf16, #tpu.memory_space<vmem>>, vector<4x8xbf16>
    %206 = arith.truncf %204 : vector<8x256xf32> to vector<8x256xbf16>
    %cst_74 = arith.constant dense<0.000000e+00> : vector<4x256xf32>
    %207 = tpu.matmul %205, %206, %cst_74 {dimension_numbers = #tpu.dot_dimension_numbers<[1], [0], [0], [1], [0, 0, 1, 1], [], []>} : vector<4x8xbf16>, vector<8x256xbf16>, vector<4x256xf32> -> vector<4x256xf32>
    %c192_i32 = arith.constant 192 : i32
    %208 = tpu.dynamic_rotate %207 by %c192_i32 dim 1 : vector<4x256xf32>, i32 -> vector<4x256xf32>
    %209 = arith.maximumf %207, %208 : vector<4x256xf32>
    %210 = arith.truncf %209 : vector<4x256xf32> to vector<4x256xbf16>
    %c2_75 = arith.constant 2 : index
    %c0_76 = arith.constant 0 : index
    %c0_77 = arith.constant 0 : index
    %211 = vector.load %arg2[%c2_75, %c0_76, %c0_77] : memref<3x256x128xbf16, #tpu.memory_space<vmem>>, vector<1x256x128xbf16>
    %212 = vector.shape_cast %211 : vector<1x256x128xbf16> to vector<256x128xbf16>
    %cst_78 = arith.constant dense<0.000000e+00> : vector<4x128xf32>
    %213 = tpu.matmul %210, %212, %cst_78 {dimension_numbers = #tpu.dot_dimension_numbers<[1], [0], [0], [1], [0, 0, 1, 1], [], []>} : vector<4x256xbf16>, vector<256x128xbf16>, vector<4x128xf32> -> vector<4x128xf32>
    %214 = vector.extract_strided_slice %213 {offsets = [0, 0], sizes = [2, 128], strides = [1, 1]} : vector<4x128xf32> to vector<2x128xf32>
    %cst_79 = arith.constant dense<0.000000e+00> : vector<128xf32>
    %215 = vector.multi_reduction <add>, %214, %cst_79 [0] : vector<2x128xf32> to vector<128xf32>
    %216 = vector.shape_cast %215 : vector<128xf32> to vector<1x128xf32>
    %217 = vector.extract_strided_slice %213 {offsets = [2, 0], sizes = [2, 128], strides = [1, 1]} : vector<4x128xf32> to vector<2x128xf32>
    %cst_80 = arith.constant dense<0.000000e+00> : vector<128xf32>
    %218 = vector.multi_reduction <add>, %217, %cst_80 [0] : vector<2x128xf32> to vector<128xf32>
    %219 = vector.shape_cast %218 : vector<128xf32> to vector<1x128xf32>
    %220 = tpu.concatenate %216, %219 in 0 : vector<1x128xf32>, vector<1x128xf32> -> vector<2x128xf32>
    %c64_i32_81 = arith.constant 64 : i32
    %221 = tpu.dynamic_rotate %220 by %c64_i32_81 dim 1 : vector<2x128xf32>, i32 -> vector<2x128xf32>
    %222 = arith.addf %220, %221 : vector<2x128xf32>
    %223 = vector.extract_strided_slice %222 {offsets = [0, 0], sizes = [2, 64], strides = [1, 1]} : vector<2x128xf32> to vector<2x64xf32>
    %cst_82 = arith.constant 2.500000e-01 : f32
    %224 = vector.broadcast %cst_82 : f32 to vector<2x64xf32>
    %225 = arith.mulf %223, %224 : vector<2x64xf32>
    %cst_83 = arith.constant 1.000000e+00 : f32
    %226 = vector.broadcast %cst_83 : f32 to vector<2x1xf32>
    %227 = tpu.concatenate %225, %226 in 1 : vector<2x64xf32>, vector<2x1xf32> -> vector<2x65xf32>
    %c0_84 = arith.constant 0 : index
    %c0_85 = arith.constant 0 : index
    %228 = vector.load %arg5[%c0_84, %c0_85] : memref<65x4xf32, #tpu.memory_space<vmem>>, vector<65x4xf32>
    %cst_86 = arith.constant dense<0.000000e+00> : vector<2x4xf32>
    %229 = tpu.matmul %227, %228, %cst_86 {dimension_numbers = #tpu.dot_dimension_numbers<[1], [0], [0], [1], [0, 0, 1, 1], [], []>} : vector<2x65xf32>, vector<65x4xf32>, vector<2x4xf32> -> vector<2x4xf32>
    %cst_87 = arith.constant dense<0xFF800000> : vector<2xf32>
    %230 = vector.multi_reduction <maximumf>, %229, %cst_87 [1] : vector<2x4xf32> to vector<2xf32>
    %231 = vector.shape_cast %230 : vector<2xf32> to vector<2x1xf32>
    %232 = vector.broadcast %231 : vector<2x1xf32> to vector<2x4xf32>
    %233 = arith.subf %229, %232 : vector<2x4xf32>
    %234 = math.exp %233 : vector<2x4xf32>
    %cst_88 = arith.constant dense<0.000000e+00> : vector<2xf32>
    %235 = vector.multi_reduction <add>, %234, %cst_88 [1] : vector<2x4xf32> to vector<2xf32>
    %236 = vector.shape_cast %235 : vector<2xf32> to vector<2x1xf32>
    %237 = math.log %236 : vector<2x1xf32>
    %238 = vector.broadcast %237 : vector<2x1xf32> to vector<2x4xf32>
    %239 = arith.subf %233, %238 : vector<2x4xf32>
    %c0_89 = arith.constant 0 : index
    %c0_90 = arith.constant 0 : index
    %240 = vector.load %arg6[%c0_89, %c0_90] : memref<2x4xf32, #tpu.memory_space<vmem>>, vector<2x4xf32>
    tpu.vector_store %arg6[%c0_89, %c0_90], %239 {strides = array<i32>} : memref<2x4xf32, #tpu.memory_space<vmem>>, vector<2x4xf32>,
    return
  }
}

</mosaic_0001>

<llo_original>
// kernel: forward.1
$region0: #{forward.1}
  #allocation0 [shape = 'u32[]', space=smem, size = 0x4, offset = 0x4, fixed_abs, tag = 'smem constant byte address 0x4 - core index']
  #allocation1 [shape = 'u32[144,128]{1,0:T(1,128)}', space=vmem, size = 0x12000, scoped, tag = 'internal scratch']
  %s0 = inlined_call_operand.vmem [shape: f32[32,16], index: 0, kind: input, shape index: {}]
  %s1 = inlined_call_operand.vmem [shape: bf16[816,256], index: 1, kind: input, shape index: {}]
  %s2 = inlined_call_operand.vmem [shape: bf16[3,256,128], index: 2, kind: input, shape index: {}]
  %s3 = inlined_call_operand.vmem [shape: bf16[16,32], index: 3, kind: input, shape index: {}]
  %s4 = inlined_call_operand.vmem [shape: f32[3,3,256], index: 4, kind: input, shape index: {}]
  %s5 = inlined_call_operand.vmem [shape: f32[65,4], index: 5, kind: input, shape index: {}]
  %s6 = inlined_call_operand.hbm [shape: f32[2,4], index: 6, kind: output, shape index: {}]
  %s7 = sld [smem:[#allocation0]]
  $region34: #{forward.1} parent=0
    _
  %s9 = ssub.s32 1, %s7
  %s10 = scalar_select 0, %s9, %s7
  $region1: #{forward.1} parent=0
    #allocation2 [shape = 'u8[1024]{0}', space=vmem, size = 0x400, scoped, tag = 'output window, operand 0, single buffered']
    #allocation3 [shape = 's32[1]{0}', space=sflag, size = 0x4, scoped, tag = 'scoped memory for forward.1']
    %11 = vsyncpa [#allocation3], 0
    // Predicated region
    $region2: #{forward.1} parent=1 // pred_check
      _
    $region3: #{forward.1} parent=1 // pred_check_branch
      %13 = sbr.rel (0) target = $region5
    $region4: #{forward.1} parent=1 // pred_region
      _
    $region5: #{forward.1} parent=1 // pred_fallthru
      _
    // Predicated region
    $region6: #{forward.1} parent=1 // pred_check
      _
    $region7: #{forward.1} parent=1 // pred_check_branch
      %15 = sbr.rel (0) target = $region9
    $region8: #{forward.1} parent=1 // pred_region
      _
    $region9: #{forward.1} parent=1 // pred_fallthru
      _
    // Predicated region
    $region10: #{forward.1} parent=1 // pred_check
      _
    $region11: #{forward.1} parent=1 // pred_check_branch
      %17 = sbr.rel (0) target = $region13
    $region12: #{forward.1} parent=1 // pred_region
      _
    $region13: #{forward.1} parent=1 // pred_fallthru
      _
    // Predicated region
    $region14: #{forward.1} parent=1 // pred_check
      _
    $region15: #{forward.1} parent=1 // pred_check_branch
      %19 = sbr.rel (0) target = $region17
    $region16: #{forward.1} parent=1 // pred_region
      _
    $region17: #{forward.1} parent=1 // pred_fallthru
      _
    // Predicated region
    $region18: #{forward.1} parent=1 // pred_check
      _
    $region19: #{forward.1} parent=1 // pred_check_branch
      %21 = sbr.rel (0) target = $region21
    $region20: #{forward.1} parent=1 // pred_region
      _
    $region21: #{forward.1} parent=1 // pred_fallthru
      _
    // Predicated region
    $region22: #{forward.1} parent=1 // pred_check
      _
    $region23: #{forward.1} parent=1 // pred_check_branch
      %23 = sbr.rel (0) target = $region25
    $region24: #{forward.1} parent=1 // pred_region
      _
    $region25: #{forward.1} parent=1 // pred_fallthru
      _
    %v25 = vld [vmem:[%s0] sm:$0xff]
    %v26 = vld [vmem:[%s0 + $0x8] sm:$0xff]
    %v27 = vld [vmem:[%s0 + $0x10] sm:$0xff]
    %v28 = vld [vmem:[%s0 + $0x18] sm:$0xff]
    %v29 = vlaneseq
    %v30 = vshrl.u32 %v29, 7
    %v31 = vadd.s32 %v30, 8
    %v32 = vadd.s32 %v30, 16
    %v33 = vadd.s32 %v30, 24
    %v34 = vand.u32 %v30, 15
    %v35 = vand.u32 %v31, 15
    %v36 = vand.u32 %v32, 15
    %v37 = vand.u32 %v33, 15
    %vm38 = vcmp.eq.s32.totalorder %v34, 0
    %vm39 = vcmp.eq.s32.totalorder %v35, 0
    %vm40 = vcmp.eq.s32.totalorder %v36, 0
    %vm41 = vcmp.eq.s32.totalorder %v37, 0
    %v42 = vrot.slane %v25, 7
    %v43 = vrot.slane %v26, 7
    %v44 = vrot.slane %v27, 7
    %v45 = vrot.slane %v28, 7
    %vm46 = vcmp.lt.s32.totalorder %v30, 1
    %v47 = vsel %vm46, %v44, %v45
    %v48 = vsel %vm46, %v43, %v44
    %v49 = vsel %vm46, %v42, %v43
    %v50 = vsel %vm46, %v45, %v42
    %v51 = vsel %vm38, %v48, %v50
    %v52 = vsel %vm39, %v47, %v49
    %v53 = vsel %vm40, %v50, %v48
    %v54 = vsel %vm41, %v49, %v47
    %vm55 = vcmp.eq.s32.totalorder %v34, 15
    %vm56 = vcmp.eq.s32.totalorder %v35, 15
    %vm57 = vcmp.eq.s32.totalorder %v36, 15
    %vm58 = vcmp.eq.s32.totalorder %v37, 15
    %v59 = vrot.slane %v25, 1
    %v60 = vrot.slane %v26, 1
    %v61 = vrot.slane %v27, 1
    %v62 = vrot.slane %v28, 1
    %vm63 = vcmp.lt.s32.totalorder %v30, 7
    %v64 = vsel %vm63, %v61, %v62
    %v65 = vsel %vm63, %v60, %v61
    %v66 = vsel %vm63, %v59, %v60
    %v67 = vsel %vm63, %v62, %v59
    %v68 = vsel %vm55, %v64, %v66
    %v69 = vsel %vm56, %v67, %v65
    %v70 = vsel %vm57, %v66, %v64
    %v71 = vsel %vm58, %v65, %v67
    %76 = vrot.lane.b32.xlu0 %v25, 16
    %v77 = vpop.permute.xlu0 %76
    %78 = vrot.lane.b32.xlu0 %v26, 16
    %v79 = vpop.permute.xlu0 %78
    %80 = vrot.lane.b32.xlu0 %v27, 16
    %v81 = vpop.permute.xlu0 %80
    %82 = vrot.lane.b32.xlu0 %v28, 16
    %v83 = vpop.permute.xlu0 %82
    %92 = vrot.lane.b32.xlu0 %v68, 32
    %v93 = vpop.permute.xlu0 %92
    %94 = vrot.lane.b32.xlu0 %v69, 32
    %v95 = vpop.permute.xlu0 %94
    %96 = vrot.lane.b32.xlu0 %v70, 32
    %v97 = vpop.permute.xlu0 %96
    %98 = vrot.lane.b32.xlu0 %v71, 32
    %v99 = vpop.permute.xlu0 %98
    %vm104 = vcmask 130048
    %v105 = vsel %vm104, %v51, %v77
    %v106 = vsel %vm104, %v52, %v79
    %v107 = vsel %vm104, %v53, %v81
    %v108 = vsel %vm104, %v54, %v83
    %vm109 = vcmask 261120
    %v110 = vsel %vm109, %v105, %v93
    %v111 = vsel %vm109, %v106, %v95
    %v112 = vsel %vm109, %v107, %v97
    %v113 = vsel %vm109, %v108, %v99
    %v114 = vpack.c.bf16 %v111, %v110
    %v115 = vpack.c.bf16 %v113, %v112
    %v116 = vld [vmem:[%s1] sm:$0xff]
    %v117 = vld [vmem:[%s1 + $0x8] sm:$0xff]
    %v118 = vld [vmem:[%s1 + $0x10] sm:$0xff]
    %v119 = vld [vmem:[%s1 + $0x18] sm:$0xff]
    %v120 = vld [vmem:[%s1 + $0x20] sm:$0xff]
    %v121 = vld [vmem:[%s1 + $0x28] sm:$0xff]
    %v122 = vld [vmem:[%s4] sm:$0x77]
    %v124 = vlaneseq
    %v125 = vshrl.u32 %v124, 7
    %v126 = vsub.s32 0, %v125
    %v127 = vrot.slane %v122, %v126
    %v128 = vlaneseq
    %v129 = vshrl.u32 %v128, 7
    %v130 = vsub.s32 4, %v129
    %v131 = vrot.slane %v122, %v130
    %v134 = vlaneseq
    %v135 = vshrl.u32 %v134, 7
    %v136 = vsub.s32 0, %v135
    %v137 = vrot.slane %v127, %v136
    %v138 = vlaneseq
    %v139 = vshrl.u32 %v138, 7
    %v140 = vsub.s32 0, %v139
    %v141 = vrot.slane %v131, %v140
    %v148 = vunpack.c.l.b16 %v116
    %v149 = vunpack.c.h.b16 %v116
    %v150 = vunpack.c.l.b16 %v117
    %v151 = vunpack.c.h.b16 %v117
    %v152 = vunpack.c.l.b16 %v118
    %v153 = vunpack.c.h.b16 %v118
    %v154 = vunpack.c.l.b16 %v119
    %v155 = vunpack.c.h.b16 %v119
    %v156 = vunpack.c.l.b16 %v120
    %v157 = vunpack.c.h.b16 %v120
    %v158 = vunpack.c.l.b16 %v121
    %v159 = vunpack.c.h.b16 %v121
    %v160 = vpack.c.b16 %v150, %v148
    %v161 = vpack.c.b16 %v151, %v149
    %v162 = vpack.c.b16 %v154, %v152
    %v163 = vpack.c.b16 %v155, %v153
    %v164 = vpack.c.b16 %v158, %v156
    %v165 = vpack.c.b16 %v159, %v157
    %vm172 = vcmask 392192
    %v174 = vsel %vm172, %v114, 0
    %v177 = vsel %vm172, %v115, 0
    %179 = vmatprep.subr.bf16.mxu0 %v161
    %180 = vmatpush1.bf16.msra.mxu0 %v160
    %181 = vmatprep.subr.bf16.mxu0 %v163
    %182 = vmatpush1.bf16.msra.mxu0 %v162
    %183 = vmatprep.subr.bf16.mxu0 %v165
    %184 = vmatpush1.bf16.msra.mxu0 %v164
    %185 = vmatprep.subr.bf16.mxu0 0
    %186 = vmatpush1.bf16.msra.mxu0 0
    %187 = vmatprep.subr.bf16.mxu0 0
    %188 = vmatpush1.bf16.msra.mxu0 0
    %189 = vmatprep.subr.bf16.mxu0 0
    %190 = vmatpush1.bf16.msra.mxu0 0
    %191 = vmatprep.subr.bf16.mxu0 0
    %192 = vmatpush1.bf16.msra.mxu0 0
    %193 = vmatprep.subr.bf16.mxu0 0
    %194 = vmatpush1.bf16.msra.mxu0 0
    %195 = vmatprep.subr.bf16.mxu0 0
    %196 = vmatpush1.bf16.msra.mxu0 0
    %197 = vmatprep.subr.bf16.mxu0 0
    %198 = vmatpush1.bf16.msra.mxu0 0
    %199 = vmatprep.subr.bf16.mxu0 0
    %200 = vmatpush1.bf16.msra.mxu0 0
    %201 = vmatprep.subr.bf16.mxu0 0
    %202 = vmatpush1.bf16.msra.mxu0 0
    %203 = vmatprep.subr.bf16.mxu0 0
    %204 = vmatpush1.bf16.msra.mxu0 0
    %205 = vmatprep.subr.bf16.mxu0 0
    %206 = vmatpush1.bf16.msra.mxu0 0
    %207 = vmatprep.subr.bf16.mxu0 0
    %208 = vmatpush1.bf16.msra.mxu0 0
    %209 = vmatprep.subr.bf16.mxu0 0
    %210 = vmatpush1.bf16.msra.mxu0 0
    %211 = vmatprep.mubr.bf16.mxu0 0
    %212 = vmatmul.mubr.bf16.gmra.mrb[0].mxu0 %v174
    %v213 = vpop.f32.mrb[0].mxu0
    %v214 = vadd.f32 %v137, %v213
    %v215 = vpop.f32.mrb[0].mxu0
    %v216 = vadd.f32 %v141, %v215
    %v217 = vpop.f32.mrb[0].mxu0
    %v218 = vadd.f32 %v137, %v217
    %v219 = vpop.f32.mrb[0].mxu0
    %v220 = vadd.f32 %v141, %v219
    %221 = vmatprep.mubr.bf16.mxu0 0
    %222 = vmatmul.mubr.bf16.gmra.mrb[0].mxu0 %v177
    %v223 = vpop.f32.mrb[0].mxu0
    %v224 = vadd.f32 %v137, %v223
    %v225 = vpop.f32.mrb[0].mxu0
    %v226 = vadd.f32 %v141, %v225
    %v227 = vpop.f32.mrb[0].mxu0
    %v228 = vadd.f32 %v137, %v227
    %v229 = vpop.f32.mrb[0].mxu0
    %v230 = vadd.f32 %v141, %v229
    %231 = vdwg.mxu0
    %v232 = vmax.f32 %v214, 0.0
    %v233 = vmax.f32 %v216, 0.0
    %v234 = vmax.f32 %v218, 0.0
    %v235 = vmax.f32 %v220, 0.0
    %v236 = vmax.f32 %v224, 0.0
    %v237 = vmax.f32 %v226, 0.0
    %v238 = vmax.f32 %v228, 0.0
    %v239 = vmax.f32 %v230, 0.0
    %v240 = vadd.f32 %v232, %v234
    %v241 = vadd.f32 %v240, %v236
    %v242 = vadd.f32 %v241, %v238
    %v243 = vrot.slane %v242, 4
    %v244 = vadd.f32 %v242, %v243
    %v245 = vrot.slane %v244, 2
    %v246 = vadd.f32 %v244, %v245
    %v247 = vrot.slane %v246, 1
    %v248 = vadd.f32 %v246, %v247
    %v249 = vadd.f32 %v233, %v235
    %v250 = vadd.f32 %v249, %v237
    %v251 = vadd.f32 %v250, %v239
    %v252 = vrot.slane %v251, 4
    %v253 = vadd.f32 %v251, %v252
    %v254 = vrot.slane %v253, 2
    %v255 = vadd.f32 %v253, %v254
    %v256 = vrot.slane %v255, 1
    %v257 = vadd.f32 %v255, %v256
    %v258 = vmul.f32 %v232, %v232
    %v259 = vmul.f32 %v233, %v233
    %v260 = vmul.f32 %v234, %v234
    %v261 = vmul.f32 %v235, %v235
    %v262 = vmul.f32 %v236, %v236
    %v263 = vmul.f32 %v237, %v237
    %v264 = vmul.f32 %v238, %v238
    %v265 = vmul.f32 %v239, %v239
    %v266 = vadd.f32 %v258, %v260
    %v267 = vadd.f32 %v266, %v262
    %v268 = vadd.f32 %v267, %v264
    %v269 = vrot.slane %v268, 4
    %v270 = vadd.f32 %v268, %v269
    %v271 = vrot.slane %v270, 2
    %v272 = vadd.f32 %v270, %v271
    %v273 = vrot.slane %v272, 1
    %v274 = vadd.f32 %v272, %v273
    %v275 = vadd.f32 %v259, %v261
    %v276 = vadd.f32 %v275, %v263
    %v277 = vadd.f32 %v276, %v265
    %v278 = vrot.slane %v277, 4
    %v279 = vadd.f32 %v277, %v278
    %v280 = vrot.slane %v279, 2
    %v281 = vadd.f32 %v279, %v280
    %v282 = vrot.slane %v281, 1
    %v283 = vadd.f32 %v281, %v282
    %vm284 = vcmask 1040384
    %v285 = vsel %vm284, %v248, %v274
    %v286 = vsel %vm284, %v257, %v283
    %287 = vrot.lane.b32.xlu0 %v285, 16
    %v288 = vpop.permute.xlu0 %287
    %289 = vrot.lane.b32.xlu0 %v286, 16
    %v290 = vpop.permute.xlu0 %289
    %v291 = vlaneseq
    %v292 = vand.u32 %v291, 127
    %vm293 = vcmp.lt.s32.totalorder %v292, 16
    %v294 = vsel %vm293, %v288, %v290
    %v295 = vsel %vm293, %v290, %v288
    %v296 = vadd.f32 %v285, %v295
    %v297 = vadd.f32 %v286, %v294
    %298 = vrot.lane.b32.xlu0 %v296, 32
    %v299 = vpop.permute.xlu0 %298
    %300 = vrot.lane.b32.xlu0 %v297, 32
    %v301 = vpop.permute.xlu0 %300
    %vm302 = vcmp.lt.s32.totalorder %v292, 32
    %v303 = vsel %vm302, %v299, %v301
    %v304 = vsel %vm302, %v301, %v299
    %v305 = vadd.f32 %v296, %v304
    %v306 = vadd.f32 %v297, %v303
    %307 = vrot.lane.b32.xlu0 %v305, 64
    %v308 = vpop.permute.xlu0 %307
    %309 = vrot.lane.b32.xlu0 %v306, 64
    %v310 = vpop.permute.xlu0 %309
    %vm311 = vcmp.lt.s32.totalorder %v292, 64
    %v312 = vsel %vm311, %v308, %v310
    %v313 = vsel %vm311, %v310, %v308
    %v314 = vadd.f32 %v305, %v313
    %v315 = vadd.f32 %v306, %v312
    %v316 = vadd.f32 %v314, %v315
    %v317 = vmul.f32 %v316, 0.001953125
    %v318 = vmul.f32 %v317, %v317
    %v320 = vrot.slane %v318, 7
    %v322 = vsub.f32 %v317, %v320
    %v323 = vmax.f32 %v322, 0.0
    %v324 = vadd.f32 %v323, 1e-05
    %v325 = vrsqrt.pop %v324
    %v327 = vcombine.low %v325, %v325
    %v329 = vmul.f32 %v122, %v327
    %v331 = vlaneseq
    %v332 = vshrl.u32 %v331, 7
    %v333 = vsub.s32 1, %v332
    %v334 = vrot.slane %v329, %v333
    %v335 = vlaneseq
    %v336 = vshrl.u32 %v335, 7
    %v337 = vsub.s32 5, %v336
    %v338 = vrot.slane %v329, %v337
    %v341 = vmul.f32 %v317, %v334
    %v342 = vmul.f32 %v317, %v338
    %v345 = vcombine.low %v341, %v342
    %v346 = vrot.slane %v345, 6
    %v348 = vsub.f32 %v122, %v346
    %v349 = vlaneseq
    %v350 = vshrl.u32 %v349, 7
    %v351 = vsub.s32 1, %v350
    %v352 = vrot.slane %v334, %v351
    %v353 = vlaneseq
    %v354 = vshrl.u32 %v353, 7
    %v355 = vsub.s32 1, %v354
    %v356 = vrot.slane %v338, %v355
    %v357 = vmul.f32 %v232, %v352
    %v358 = vmul.f32 %v233, %v356
    %v359 = vmul.f32 %v234, %v352
    %v360 = vmul.f32 %v235, %v356
    %v361 = vmul.f32 %v236, %v352
    %v362 = vmul.f32 %v237, %v356
    %v363 = vmul.f32 %v238, %v352
    %v364 = vmul.f32 %v239, %v356
    %v366 = vlaneseq
    %v367 = vshrl.u32 %v366, 7
    %v368 = vsub.s32 2, %v367
    %v369 = vrot.slane %v348, %v368
    %v370 = vlaneseq
    %v371 = vshrl.u32 %v370, 7
    %v372 = vsub.s32 6, %v371
    %v373 = vrot.slane %v348, %v372
    %v376 = vlaneseq
    %v377 = vshrl.u32 %v376, 7
    %v378 = vsub.s32 2, %v377
    %v379 = vrot.slane %v369, %v378
    %v380 = vlaneseq
    %v381 = vshrl.u32 %v380, 7
    %v382 = vsub.s32 2, %v381
    %v383 = vrot.slane %v373, %v382
    %v384 = vadd.f32 %v357, %v379
    %v385 = vadd.f32 %v358, %v383
    %v386 = vadd.f32 %v359, %v379
    %v387 = vadd.f32 %v360, %v383
    %v388 = vadd.f32 %v361, %v379
    %v389 = vadd.f32 %v362, %v383
    %v390 = vadd.f32 %v363, %v379
    %v391 = vadd.f32 %v364, %v383
    %v392 = vrot.slane %v384, 1
    %v393 = vrot.slane %v385, 1
    %v394 = vrot.slane %v386, 1
    %v395 = vrot.slane %v387, 1
    %v396 = vrot.slane %v388, 1
    %v397 = vrot.slane %v389, 1
    %v398 = vrot.slane %v390, 1
    %v399 = vrot.slane %v391, 1
    %v400 = vsel %vm63, %v396, %v398
    %v401 = vsel %vm63, %v397, %v399
    %v402 = vsel %vm63, %v394, %v396
    %v403 = vsel %vm63, %v395, %v397
    %v404 = vsel %vm63, %v392, %v394
    %v405 = vsel %vm63, %v393, %v395
    %v406 = vsel %vm63, %v398, %v392
    %v407 = vsel %vm63, %v399, %v393
    %v408 = vmax.f32 %v384, %v404
    %v409 = vmax.f32 %v385, %v405
    %v410 = vmax.f32 %v386, %v402
    %v411 = vmax.f32 %v387, %v403
    %v412 = vmax.f32 %v388, %v400
    %v413 = vmax.f32 %v389, %v401
    %v414 = vmax.f32 %v390, %v406
    %v415 = vmax.f32 %v391, %v407
    %v416 = vld [vmem:[%s3] sm:$0xf]
    %v417 = vld [vmem:[%s3 + $0x4] sm:$0xf]
    %v418 = vpack.c.bf16 %v410, %v408
    %v419 = vpack.c.bf16 %v411, %v409
    %v420 = vpack.c.bf16 %v414, %v412
    %v421 = vpack.c.bf16 %v415, %v413
    %v424 = vunpack.c.l.b16 %v416
    %v425 = vunpack.c.l.b16 %v417
    %v426 = vpack.c.b16 %v425, %v424
    %v428 = vsel %vm109, %v426, 0
    %430 = vmatprep.subr.bf16.mxu0 %v419
    %431 = vmatpush1.bf16.msra.mxu0 %v418
    %432 = vmatprep.subr.bf16.mxu0 %v421
    %433 = vmatpush1.bf16.msra.mxu0 %v420
    %434 = vmatprep.subr.bf16.mxu0 0
    %435 = vmatpush1.bf16.msra.mxu0 0
    %436 = vmatprep.subr.bf16.mxu0 0
    %437 = vmatpush1.bf16.msra.mxu0 0
    %438 = vmatprep.subr.bf16.mxu0 0
    %439 = vmatpush1.bf16.msra.mxu0 0
    %440 = vmatprep.subr.bf16.mxu0 0
    %441 = vmatpush1.bf16.msra.mxu0 0
    %442 = vmatprep.subr.bf16.mxu0 0
    %443 = vmatpush1.bf16.msra.mxu0 0
    %444 = vmatprep.subr.bf16.mxu0 0
    %445 = vmatpush1.bf16.msra.mxu0 0
    %446 = vmatprep.subr.bf16.mxu0 0
    %447 = vmatpush1.bf16.msra.mxu0 0
    %448 = vmatprep.subr.bf16.mxu0 0
    %449 = vmatpush1.bf16.msra.mxu0 0
    %450 = vmatprep.subr.bf16.mxu0 0
    %451 = vmatpush1.bf16.msra.mxu0 0
    %452 = vmatprep.subr.bf16.mxu0 0
    %453 = vmatpush1.bf16.msra.mxu0 0
    %454 = vmatprep.subr.bf16.mxu0 0
    %455 = vmatpush1.bf16.msra.mxu0 0
    %456 = vmatprep.subr.bf16.mxu0 0
    %457 = vmatpush1.bf16.msra.mxu0 0
    %458 = vmatprep.subr.bf16.mxu0 0
    %459 = vmatpush1.bf16.msra.mxu0 0
    %460 = vmatprep.subr.bf16.mxu0 0
    %461 = vmatpush1.bf16.msra.mxu0 0
    %462 = vmatprep.mubr.bf16.mxu0 0
    %463 = vmatmul.mubr.bf16.gmra.mrb[0].mxu0 %v428
    %v464 = vpop.f32.mrb[0].mxu0
    %v465 = vadd.f32 0.0, %v464
    %v466 = vpop.f32.mrb[0].mxu0
    %v467 = vadd.f32 0.0, %v466
    %v468 = vpop.f32.mrb[0].mxu0
    %v469 = vadd.f32 0.0, %v468
    %v470 = vpop.f32.mrb[0].mxu0
    %v471 = vadd.f32 0.0, %v470
    %472 = vdwg.mxu0
    %473 = vrot.lane.b32.xlu0 %v465, 112
    %v474 = vpop.permute.xlu0 %473
    %475 = vrot.lane.b32.xlu0 %v469, 112
    %v476 = vpop.permute.xlu0 %475
    %477 = vrot.lane.b32.xlu0 %v467, 112
    %v478 = vpop.permute.xlu0 %477
    %479 = vrot.lane.b32.xlu0 %v471, 112
    %v480 = vpop.permute.xlu0 %479
    %vm481 = vcmp.lt.s32.totalorder %v292, 112
    %v482 = vsel %vm481, %v474, %v478
    %v483 = vsel %vm481, %v476, %v480
    %v484 = vsel %vm481, %v478, %v474
    %v485 = vsel %vm481, %v480, %v476
    %v486 = vmax.f32 %v465, %v482
    %v487 = vmax.f32 %v467, %v484
    %v488 = vmax.f32 %v469, %v483
    %v489 = vmax.f32 %v471, %v485
    %v490 = vpack.c.bf16 %v488, %v486
    %v491 = vpack.c.bf16 %v489, %v487
    %v492 = vld [vmem:[%s2] sm:$0xf]
    %v493 = vld [vmem:[%s2 + $0x4] sm:$0xf]
    %v494 = vld [vmem:[%s2 + $0x8] sm:$0xf]
    %v495 = vld [vmem:[%s2 + $0xc] sm:$0xf]
    %v496 = vld [vmem:[%s2 + $0x10] sm:$0xf]
    %v497 = vld [vmem:[%s2 + $0x14] sm:$0xf]
    %v498 = vld [vmem:[%s2 + $0x18] sm:$0xf]
    %v499 = vld [vmem:[%s2 + $0x1c] sm:$0xf]
    %v500 = vld [vmem:[%s2 + $0x20] sm:$0xf]
    %v501 = vld [vmem:[%s2 + $0x24] sm:$0xf]
    %v502 = vld [vmem:[%s2 + $0x28] sm:$0xf]
    %v503 = vld [vmem:[%s2 + $0x2c] sm:$0xf]
    %v504 = vld [vmem:[%s2 + $0x30] sm:$0xf]
    %v505 = vld [vmem:[%s2 + $0x34] sm:$0xf]
    %v506 = vld [vmem:[%s2 + $0x38] sm:$0xf]
    %v507 = vld [vmem:[%s2 + $0x3c] sm:$0xf]
    %v508 = vld [vmem:[%s2 + $0x40] sm:$0xf]
    %v509 = vld [vmem:[%s2 + $0x44] sm:$0xf]
    %v510 = vld [vmem:[%s2 + $0x48] sm:$0xf]
    %v511 = vld [vmem:[%s2 + $0x4c] sm:$0xf]
    %v512 = vld [vmem:[%s2 + $0x50] sm:$0xf]
    %v513 = vld [vmem:[%s2 + $0x54] sm:$0xf]
    %v514 = vld [vmem:[%s2 + $0x58] sm:$0xf]
    %v515 = vld [vmem:[%s2 + $0x5c] sm:$0xf]
    %v516 = vld [vmem:[%s2 + $0x60] sm:$0xf]
    %v517 = vld [vmem:[%s2 + $0x64] sm:$0xf]
    %v518 = vld [vmem:[%s2 + $0x68] sm:$0xf]
    %v519 = vld [vmem:[%s2 + $0x6c] sm:$0xf]
    %v520 = vld [vmem:[%s2 + $0x70] sm:$0xf]
    %v521 = vld [vmem:[%s2 + $0x74] sm:$0xf]
    %v522 = vld [vmem:[%s2 + $0x78] sm:$0xf]
    %v523 = vld [vmem:[%s2 + $0x7c] sm:$0xf]
    %v556 = vunpack.c.l.b16 %v492
    %v557 = vunpack.c.l.b16 %v493
    %v558 = vunpack.c.l.b16 %v494
    %v559 = vunpack.c.l.b16 %v495
    %v560 = vunpack.c.l.b16 %v496
    %v561 = vunpack.c.l.b16 %v497
    %v562 = vunpack.c.l.b16 %v498
    %v563 = vunpack.c.l.b16 %v499
    %v564 = vunpack.c.l.b16 %v500
    %v565 = vunpack.c.l.b16 %v501
    %v566 = vunpack.c.l.b16 %v502
    %v567 = vunpack.c.l.b16 %v503
    %v568 = vunpack.c.l.b16 %v504
    %v569 = vunpack.c.l.b16 %v505
    %v570 = vunpack.c.l.b16 %v506
    %v571 = vunpack.c.l.b16 %v507
    %v572 = vunpack.c.l.b16 %v508
    %v573 = vunpack.c.l.b16 %v509
    %v574 = vunpack.c.l.b16 %v510
    %v575 = vunpack.c.l.b16 %v511
    %v576 = vunpack.c.l.b16 %v512
    %v577 = vunpack.c.l.b16 %v513
    %v578 = vunpack.c.l.b16 %v514
    %v579 = vunpack.c.l.b16 %v515
    %v580 = vunpack.c.l.b16 %v516
    %v581 = vunpack.c.l.b16 %v517
    %v582 = vunpack.c.l.b16 %v518
    %v583 = vunpack.c.l.b16 %v519
    %v584 = vunpack.c.l.b16 %v520
    %v585 = vunpack.c.l.b16 %v521
    %v586 = vunpack.c.l.b16 %v522
    %v587 = vunpack.c.l.b16 %v523
    %v588 = vpack.c.b16 %v557, %v556
    %v589 = vpack.c.b16 %v559, %v558
    %v590 = vpack.c.b16 %v561, %v560
    %v591 = vpack.c.b16 %v563, %v562
    %v592 = vpack.c.b16 %v565, %v564
    %v593 = vpack.c.b16 %v567, %v566
    %v594 = vpack.c.b16 %v569, %v568
    %v595 = vpack.c.b16 %v571, %v570
    %v596 = vpack.c.b16 %v573, %v572
    %v597 = vpack.c.b16 %v575, %v574
    %v598 = vpack.c.b16 %v577, %v576
    %v599 = vpack.c.b16 %v579, %v578
    %v600 = vpack.c.b16 %v581, %v580
    %v601 = vpack.c.b16 %v583, %v582
    %v602 = vpack.c.b16 %v585, %v584
    %v603 = vpack.c.b16 %v587, %v586
    %620 = vmatprep.subr.bf16.mxu0 0
    %621 = vmatpush1.bf16.msra.mxu0 %v588
    %622 = vmatprep.subr.bf16.mxu0 0
    %623 = vmatpush1.bf16.msra.mxu0 %v589
    %624 = vmatprep.subr.bf16.mxu0 0
    %625 = vmatpush1.bf16.msra.mxu0 %v590
    %626 = vmatprep.subr.bf16.mxu0 0
    %627 = vmatpush1.bf16.msra.mxu0 %v591
    %628 = vmatprep.subr.bf16.mxu0 0
    %629 = vmatpush1.bf16.msra.mxu0 %v592
    %630 = vmatprep.subr.bf16.mxu0 0
    %631 = vmatpush1.bf16.msra.mxu0 %v593
    %632 = vmatprep.subr.bf16.mxu0 0
    %633 = vmatpush1.bf16.msra.mxu0 %v594
    %634 = vmatprep.subr.bf16.mxu0 0
    %635 = vmatpush1.bf16.msra.mxu0 %v595
    %636 = vmatprep.subr.bf16.mxu0 0
    %637 = vmatpush1.bf16.msra.mxu0 %v596
    %638 = vmatprep.subr.bf16.mxu0 0
    %639 = vmatpush1.bf16.msra.mxu0 %v597
    %640 = vmatprep.subr.bf16.mxu0 0
    %641 = vmatpush1.bf16.msra.mxu0 %v598
    %642 = vmatprep.subr.bf16.mxu0 0
    %643 = vmatpush1.bf16.msra.mxu0 %v599
    %644 = vmatprep.subr.bf16.mxu0 0
    %645 = vmatpush1.bf16.msra.mxu0 %v600
    %646 = vmatprep.subr.bf16.mxu0 0
    %647 = vmatpush1.bf16.msra.mxu0 %v601
    %648 = vmatprep.subr.bf16.mxu0 0
    %649 = vmatpush1.bf16.msra.mxu0 %v602
    %650 = vmatprep.subr.bf16.mxu0 0
    %651 = vmatpush1.bf16.msra.mxu0 %v603
    %652 = vmatprep.mubr.bf16.mxu0 %v491
    %653 = vmatmul.mubr.bf16.gmra.mrb[0].mxu0 %v490
    %v654 = vpop.f32.mrb[0].mxu0
    %v655 = vadd.f32 0.0, %v654
    %v656 = vpop.f32.mrb[0].mxu0
    %v657 = vpop.f32.mrb[0].mxu0
    %v658 = vadd.f32 0.0, %v657
    %v659 = vpop.f32.mrb[0].mxu0
    %660 = vdwg.mxu0
    %v661 = vand.u32 %v30, 7
    %v662 = vand.u32 %v31, 7
    %vm663 = vcmp.eq.s32.totalorder %v661, 0
    %vm664 = vcmp.eq.s32.totalorder %v662, 0
    %v665 = vrot.slane %v655, 7
    %v666 = vrot.slane %v658, 7
    %v667 = vsel %vm46, %v665, %v666
    %v668 = vsel %vm46, %v666, %v665
    %v669 = vsel %vm663, %v667, %v668
    %v670 = vsel %vm664, %v668, %v667
    %vm671 = vcmp.eq.s32.totalorder %v661, 7
    %vm672 = vcmp.eq.s32.totalorder %v662, 7
    %v673 = vrot.slane %v655, 1
    %v674 = vrot.slane %v658, 1
    %v675 = vsel %vm63, %v673, %v674
    %v676 = vsel %vm63, %v674, %v673
    %v677 = vsel %vm671, %v676, %v675
    %v678 = vsel %vm672, %v675, %v676
    %v679 = vpack.c.bf16 %v670, %v669
    %v680 = vpack.c.bf16 %v658, %v655
    %v681 = vpack.c.bf16 %v678, %v677
    %v682 = vld [vmem:[%s1 + $0x30] sm:$0xff]
    %v683 = vld [vmem:[%s1 + $0x38] sm:$0xff]
    %v684 = vld [vmem:[%s1 + $0x40] sm:$0xff]
    %v685 = vld [vmem:[%s1 + $0x48] sm:$0xff]
    %v686 = vld [vmem:[%s1 + $0x50] sm:$0xff]
    %v687 = vld [vmem:[%s1 + $0x58] sm:$0xff]
    %v688 = vld [vmem:[%s1 + $0x60] sm:$0xff]
    %v689 = vld [vmem:[%s1 + $0x68] sm:$0xff]
    %v690 = vld [vmem:[%s1 + $0x70] sm:$0xff]
    %v691 = vld [vmem:[%s1 + $0x78] sm:$0xff]
    %v692 = vld [vmem:[%s1 + $0x80] sm:$0xff]
    %v693 = vld [vmem:[%s1 + $0x88] sm:$0xff]
    %v694 = vld [vmem:[%s1 + $0x90] sm:$0xff]
    %v695 = vld [vmem:[%s1 + $0x98] sm:$0xff]
    %v696 = vld [vmem:[%s1 + $0xa0] sm:$0xff]
    %v697 = vld [vmem:[%s1 + $0xa8] sm:$0xff]
    %v698 = vld [vmem:[%s1 + $0xb0] sm:$0xff]
    %v699 = vld [vmem:[%s1 + $0xb8] sm:$0xff]
    %v700 = vld [vmem:[%s1 + $0xc0] sm:$0xff]
    %v701 = vld [vmem:[%s1 + $0xc8] sm:$0xff]
    %v702 = vld [vmem:[%s1 + $0xd0] sm:$0xff]
    %v703 = vld [vmem:[%s1 + $0xd8] sm:$0xff]
    %v704 = vld [vmem:[%s1 + $0xe0] sm:$0xff]
    %v705 = vld [vmem:[%s1 + $0xe8] sm:$0xff]
    %v706 = vld [vmem:[%s1 + $0xf0] sm:$0xff]
    %v707 = vld [vmem:[%s1 + $0xf8] sm:$0xff]
    %v708 = vld [vmem:[%s1 + $0x100] sm:$0xff]
    %v709 = vld [vmem:[%s1 + $0x108] sm:$0xff]
    %v710 = vld [vmem:[%s1 + $0x110] sm:$0xff]
    %v711 = vld [vmem:[%s1 + $0x118] sm:$0xff]
    %v712 = vld [vmem:[%s1 + $0x120] sm:$0xff]
    %v713 = vld [vmem:[%s1 + $0x128] sm:$0xff]
    %v714 = vld [vmem:[%s1 + $0x130] sm:$0xff]
    %v715 = vld [vmem:[%s1 + $0x138] sm:$0xff]
    %v716 = vld [vmem:[%s1 + $0x140] sm:$0xff]
    %v717 = vld [vmem:[%s1 + $0x148] sm:$0xff]
    %v718 = vld [vmem:[%s1 + $0x150] sm:$0xff]
    %v719 = vld [vmem:[%s1 + $0x158] sm:$0xff]
    %v720 = vld [vmem:[%s1 + $0x160] sm:$0xff]
    %v721 = vld [vmem:[%s1 + $0x168] sm:$0xff]
    %v722 = vld [vmem:[%s1 + $0x170] sm:$0xff]
    %v723 = vld [vmem:[%s1 + $0x178] sm:$0xff]
    %v724 = vld [vmem:[%s1 + $0x180] sm:$0xff]
    %v725 = vld [vmem:[%s1 + $0x188] sm:$0xff]
    %v726 = vld [vmem:[%s1 + $0x190] sm:$0xff]
    %v727 = vld [vmem:[%s1 + $0x198] sm:$0xff]
    %v728 = vld [vmem:[%s1 + $0x1a0] sm:$0xff]
    %v729 = vld [vmem:[%s1 + $0x1a8] sm:$0xff]
    %s730 = scalar_lea.vmem %s4, 8
    %v731 = vld [vmem:[%s730] sm:$0x77]
    %v733 = vlaneseq
    %v734 = vshrl.u32 %v733, 7
    %v735 = vsub.s32 0, %v734
    %v736 = vrot.slane %v731, %v735
    %v737 = vlaneseq
    %v738 = vshrl.u32 %v737, 7
    %v739 = vsub.s32 4, %v738
    %v740 = vrot.slane %v731, %v739
    %v743 = vlaneseq
    %v744 = vshrl.u32 %v743, 7
    %v745 = vsub.s32 0, %v744
    %v746 = vrot.slane %v736, %v745
    %v747 = vlaneseq
    %v748 = vshrl.u32 %v747, 7
    %v749 = vsub.s32 0, %v748
    %v750 = vrot.slane %v740, %v749
    %v799 = vunpack.c.l.b16 %v682
    %v800 = vunpack.c.h.b16 %v682
    %v801 = vunpack.c.l.b16 %v683
    %v802 = vunpack.c.h.b16 %v683
    %v803 = vunpack.c.l.b16 %v684
    %v804 = vunpack.c.h.b16 %v684
    %v805 = vunpack.c.l.b16 %v685
    %v806 = vunpack.c.h.b16 %v685
    %v807 = vunpack.c.l.b16 %v686
    %v808 = vunpack.c.h.b16 %v686
    %v809 = vunpack.c.l.b16 %v687
    %v810 = vunpack.c.h.b16 %v687
    %v811 = vunpack.c.l.b16 %v688
    %v812 = vunpack.c.h.b16 %v688
    %v813 = vunpack.c.l.b16 %v689
    %v814 = vunpack.c.h.b16 %v689
    %v815 = vunpack.c.l.b16 %v690
    %v816 = vunpack.c.h.b16 %v690
    %v817 = vunpack.c.l.b16 %v691
    %v818 = vunpack.c.h.b16 %v691
    %v819 = vunpack.c.l.b16 %v692
    %v820 = vunpack.c.h.b16 %v692
    %v821 = vunpack.c.l.b16 %v693
    %v822 = vunpack.c.h.b16 %v693
    %v823 = vunpack.c.l.b16 %v694
    %v824 = vunpack.c.h.b16 %v694
    %v825 = vunpack.c.l.b16 %v695
    %v826 = vunpack.c.h.b16 %v695
    %v827 = vunpack.c.l.b16 %v696
    %v828 = vunpack.c.h.b16 %v696
    %v829 = vunpack.c.l.b16 %v697
    %v830 = vunpack.c.h.b16 %v697
    %v831 = vunpack.c.l.b16 %v698
    %v832 = vunpack.c.h.b16 %v698
    %v833 = vunpack.c.l.b16 %v699
    %v834 = vunpack.c.h.b16 %v699
    %v835 = vunpack.c.l.b16 %v700
    %v836 = vunpack.c.h.b16 %v700
    %v837 = vunpack.c.l.b16 %v701
    %v838 = vunpack.c.h.b16 %v701
    %v839 = vunpack.c.l.b16 %v702
    %v840 = vunpack.c.h.b16 %v702
    %v841 = vunpack.c.l.b16 %v703
    %v842 = vunpack.c.h.b16 %v703
    %v843 = vunpack.c.l.b16 %v704
    %v844 = vunpack.c.h.b16 %v704
    %v845 = vunpack.c.l.b16 %v705
    %v846 = vunpack.c.h.b16 %v705
    %v847 = vunpack.c.l.b16 %v706
    %v848 = vunpack.c.h.b16 %v706
    %v849 = vunpack.c.l.b16 %v707
    %v850 = vunpack.c.h.b16 %v707
    %v851 = vunpack.c.l.b16 %v708
    %v852 = vunpack.c.h.b16 %v708
    %v853 = vunpack.c.l.b16 %v709
    %v854 = vunpack.c.h.b16 %v709
    %v855 = vunpack.c.l.b16 %v710
    %v856 = vunpack.c.h.b16 %v710
    %v857 = vunpack.c.l.b16 %v711
    %v858 = vunpack.c.h.b16 %v711
    %v859 = vunpack.c.l.b16 %v712
    %v860 = vunpack.c.h.b16 %v712
    %v861 = vunpack.c.l.b16 %v713
    %v862 = vunpack.c.h.b16 %v713
    %v863 = vunpack.c.l.b16 %v714
    %v864 = vunpack.c.h.b16 %v714
    %v865 = vunpack.c.l.b16 %v715
    %v866 = vunpack.c.h.b16 %v715
    %v867 = vunpack.c.l.b16 %v716
    %v868 = vunpack.c.h.b16 %v716
    %v869 = vunpack.c.l.b16 %v717
    %v870 = vunpack.c.h.b16 %v717
    %v871 = vunpack.c.l.b16 %v718
    %v872 = vunpack.c.h.b16 %v718
    %v873 = vunpack.c.l.b16 %v719
    %v874 = vunpack.c.h.b16 %v719
    %v875 = vunpack.c.l.b16 %v720
    %v876 = vunpack.c.h.b16 %v720
    %v877 = vunpack.c.l.b16 %v721
    %v878 = vunpack.c.h.b16 %v721
    %v879 = vunpack.c.l.b16 %v722
    %v880 = vunpack.c.h.b16 %v722
    %v881 = vunpack.c.l.b16 %v723
    %v882 = vunpack.c.h.b16 %v723
    %v883 = vunpack.c.l.b16 %v724
    %v884 = vunpack.c.h.b16 %v724
    %v885 = vunpack.c.l.b16 %v725
    %v886 = vunpack.c.h.b16 %v725
    %v887 = vunpack.c.l.b16 %v726
    %v888 = vunpack.c.h.b16 %v726
    %v889 = vunpack.c.l.b16 %v727
    %v890 = vunpack.c.h.b16 %v727
    %v891 = vunpack.c.l.b16 %v728
    %v892 = vunpack.c.h.b16 %v728
    %v893 = vunpack.c.l.b16 %v729
    %v894 = vunpack.c.h.b16 %v729
    %v895 = vpack.c.b16 %v801, %v799
    %v896 = vpack.c.b16 %v802, %v800
    %v897 = vpack.c.b16 %v805, %v803
    %v898 = vpack.c.b16 %v806, %v804
    %v899 = vpack.c.b16 %v809, %v807
    %v900 = vpack.c.b16 %v810, %v808
    %v901 = vpack.c.b16 %v813, %v811
    %v902 = vpack.c.b16 %v814, %v812
    %v903 = vpack.c.b16 %v817, %v815
    %v904 = vpack.c.b16 %v818, %v816
    %v905 = vpack.c.b16 %v821, %v819
    %v906 = vpack.c.b16 %v822, %v820
    %v907 = vpack.c.b16 %v825, %v823
    %v908 = vpack.c.b16 %v826, %v824
    %v909 = vpack.c.b16 %v829, %v827
    %v910 = vpack.c.b16 %v830, %v828
    %v911 = vpack.c.b16 %v833, %v831
    %v912 = vpack.c.b16 %v834, %v832
    %v913 = vpack.c.b16 %v837, %v835
    %v914 = vpack.c.b16 %v838, %v836
    %v915 = vpack.c.b16 %v841, %v839
    %v916 = vpack.c.b16 %v842, %v840
    %v917 = vpack.c.b16 %v845, %v843
    %v918 = vpack.c.b16 %v846, %v844
    %v919 = vpack.c.b16 %v849, %v847
    %v920 = vpack.c.b16 %v850, %v848
    %v921 = vpack.c.b16 %v853, %v851
    %v922 = vpack.c.b16 %v854, %v852
    %v923 = vpack.c.b16 %v857, %v855
    %v924 = vpack.c.b16 %v858, %v856
    %v925 = vpack.c.b16 %v861, %v859
    %v926 = vpack.c.b16 %v862, %v860
    %v927 = vpack.c.b16 %v865, %v863
    %v928 = vpack.c.b16 %v866, %v864
    %v929 = vpack.c.b16 %v869, %v867
    %v930 = vpack.c.b16 %v870, %v868
    %v931 = vpack.c.b16 %v873, %v871
    %v932 = vpack.c.b16 %v874, %v872
    %v933 = vpack.c.b16 %v877, %v875
    %v934 = vpack.c.b16 %v878, %v876
    %v935 = vpack.c.b16 %v881, %v879
    %v936 = vpack.c.b16 %v882, %v880
    %v937 = vpack.c.b16 %v885, %v883
    %v938 = vpack.c.b16 %v886, %v884
    %v939 = vpack.c.b16 %v889, %v887
    %v940 = vpack.c.b16 %v890, %v888
    %v941 = vpack.c.b16 %v893, %v891
    %v942 = vpack.c.b16 %v894, %v892
    %991 = vmatprep.subr.bf16.mxu0 %v896
    %992 = vmatpush1.bf16.msra.mxu0 %v895
    %993 = vmatprep.subr.bf16.mxu0 %v898
    %994 = vmatpush1.bf16.msra.mxu0 %v897
    %995 = vmatprep.subr.bf16.mxu0 %v900
    %996 = vmatpush1.bf16.msra.mxu0 %v899
    %997 = vmatprep.subr.bf16.mxu0 %v902
    %998 = vmatpush1.bf16.msra.mxu0 %v901
    %999 = vmatprep.subr.bf16.mxu0 %v904
    %1000 = vmatpush1.bf16.msra.mxu0 %v903
    %1001 = vmatprep.subr.bf16.mxu0 %v906
    %1002 = vmatpush1.bf16.msra.mxu0 %v905
    %1003 = vmatprep.subr.bf16.mxu0 %v908
    %1004 = vmatpush1.bf16.msra.mxu0 %v907
    %1005 = vmatprep.subr.bf16.mxu0 %v910
    %1006 = vmatpush1.bf16.msra.mxu0 %v909
    %1007 = vmatprep.subr.bf16.mxu0 %v912
    %1008 = vmatpush1.bf16.msra.mxu0 %v911
    %1009 = vmatprep.subr.bf16.mxu0 %v914
    %1010 = vmatpush1.bf16.msra.mxu0 %v913
    %1011 = vmatprep.subr.bf16.mxu0 %v916
    %1012 = vmatpush1.bf16.msra.mxu0 %v915
    %1013 = vmatprep.subr.bf16.mxu0 %v918
    %1014 = vmatpush1.bf16.msra.mxu0 %v917
    %1015 = vmatprep.subr.bf16.mxu0 %v920
    %1016 = vmatpush1.bf16.msra.mxu0 %v919
    %1017 = vmatprep.subr.bf16.mxu0 %v922
    %1018 = vmatpush1.bf16.msra.mxu0 %v921
    %1019 = vmatprep.subr.bf16.mxu0 %v924
    %1020 = vmatpush1.bf16.msra.mxu0 %v923
    %1021 = vmatprep.subr.bf16.mxu0 %v926
    %1022 = vmatpush1.bf16.msra.mxu0 %v925
    %1023 = vmatprep.mubr.bf16.mxu0 %v680
    %1024 = vmatmul.mubr.bf16.gmra.mrb[0].mxu0 %v679
    %v1025 = vpop.f32.mrb[0].mxu0
    %v1026 = vadd.f32 %v746, %v1025
    %v1027 = vpop.f32.mrb[0].mxu0
    %v1028 = vadd.f32 %v750, %v1027
    %v1029 = vpop.f32.mrb[0].mxu0
    %v1030 = vadd.f32 %v746, %v1029
    %v1031 = vpop.f32.mrb[0].mxu0
    %v1032 = vadd.f32 %v750, %v1031
    %1033 = vdwg.mxu0
    %1034 = vmatprep.subr.bf16.mxu0 %v928
    %1035 = vmatpush1.bf16.msra.mxu0 %v927
    %1036 = vmatprep.subr.bf16.mxu0 %v930
    %1037 = vmatpush1.bf16.msra.mxu0 %v929
    %1038 = vmatprep.subr.bf16.mxu0 %v932
    %1039 = vmatpush1.bf16.msra.mxu0 %v931
    %1040 = vmatprep.subr.bf16.mxu0 %v934
    %1041 = vmatpush1.bf16.msra.mxu0 %v933
    %1042 = vmatprep.subr.bf16.mxu0 %v936
    %1043 = vmatpush1.bf16.msra.mxu0 %v935
    %1044 = vmatprep.subr.bf16.mxu0 %v938
    %1045 = vmatpush1.bf16.msra.mxu0 %v937
    %1046 = vmatprep.subr.bf16.mxu0 %v940
    %1047 = vmatpush1.bf16.msra.mxu0 %v939
    %1048 = vmatprep.subr.bf16.mxu0 %v942
    %1049 = vmatpush1.bf16.msra.mxu0 %v941
    %1050 = vmatprep.subr.bf16.mxu0 0
    %1051 = vmatpush1.bf16.msra.mxu0 0
    %1052 = vmatprep.subr.bf16.mxu0 0
    %1053 = vmatpush1.bf16.msra.mxu0 0
    %1054 = vmatprep.subr.bf16.mxu0 0
    %1055 = vmatpush1.bf16.msra.mxu0 0
    %1056 = vmatprep.subr.bf16.mxu0 0
    %1057 = vmatpush1.bf16.msra.mxu0 0
    %1058 = vmatprep.subr.bf16.mxu0 0
    %1059 = vmatpush1.bf16.msra.mxu0 0
    %1060 = vmatprep.subr.bf16.mxu0 0
    %1061 = vmatpush1.bf16.msra.mxu0 0
    %1062 = vmatprep.subr.bf16.mxu0 0
    %1063 = vmatpush1.bf16.msra.mxu0 0
    %1064 = vmatprep.subr.bf16.mxu0 0
    %1065 = vmatpush1.bf16.msra.mxu0 0
    %1066 = vmatprep.mubr.bf16.mxu0 0
    %1067 = vmatmul.mubr.bf16.gmra.mrb[0].mxu0 %v681
    %v1068 = vpop.f32.mrb[0].mxu0
    %v1069 = vadd.f32 %v1026, %v1068
    %v1070 = vpop.f32.mrb[0].mxu0
    %v1071 = vadd.f32 %v1028, %v1070
    %v1072 = vpop.f32.mrb[0].mxu0
    %v1073 = vadd.f32 %v1030, %v1072
    %v1074 = vpop.f32.mrb[0].mxu0
    %v1075 = vadd.f32 %v1032, %v1074
    %1076 = vdwg.mxu0
    %v1077 = vmax.f32 %v1069, 0.0
    %v1078 = vmax.f32 %v1071, 0.0
    %v1079 = vmax.f32 %v1073, 0.0
    %v1080 = vmax.f32 %v1075, 0.0
    %v1081 = vadd.f32 %v1077, %v1079
    %v1082 = vrot.slane %v1081, 4
    %v1083 = vadd.f32 %v1081, %v1082
    %v1084 = vrot.slane %v1083, 2
    %v1085 = vadd.f32 %v1083, %v1084
    %v1086 = vrot.slane %v1085, 1
    %v1087 = vadd.f32 %v1085, %v1086
    %v1088 = vadd.f32 %v1078, %v1080
    %v1089 = vrot.slane %v1088, 4
    %v1090 = vadd.f32 %v1088, %v1089
    %v1091 = vrot.slane %v1090, 2
    %v1092 = vadd.f32 %v1090, %v1091
    %v1093 = vrot.slane %v1092, 1
    %v1094 = vadd.f32 %v1092, %v1093
    %v1095 = vmul.f32 %v1077, %v1077
    %v1096 = vmul.f32 %v1078, %v1078
    %v1097 = vmul.f32 %v1079, %v1079
    %v1098 = vmul.f32 %v1080, %v1080
    %v1099 = vadd.f32 %v1095, %v1097
    %v1100 = vrot.slane %v1099, 4
    %v1101 = vadd.f32 %v1099, %v1100
    %v1102 = vrot.slane %v1101, 2
    %v1103 = vadd.f32 %v1101, %v1102
    %v1104 = vrot.slane %v1103, 1
    %v1105 = vadd.f32 %v1103, %v1104
    %v1106 = vadd.f32 %v1096, %v1098
    %v1107 = vrot.slane %v1106, 4
    %v1108 = vadd.f32 %v1106, %v1107
    %v1109 = vrot.slane %v1108, 2
    %v1110 = vadd.f32 %v1108, %v1109
    %v1111 = vrot.slane %v1110, 1
    %v1112 = vadd.f32 %v1110, %v1111
    %v1113 = vsel %vm284, %v1087, %v1105
    %v1114 = vsel %vm284, %v1094, %v1112
    %1115 = vrot.lane.b32.xlu0 %v1113, 32
    %v1116 = vpop.permute.xlu0 %1115
    %1117 = vrot.lane.b32.xlu0 %v1114, 32
    %v1118 = vpop.permute.xlu0 %1117
    %v1119 = vsel %vm302, %v1116, %v1118
    %v1120 = vsel %vm302, %v1118, %v1116
    %v1121 = vadd.f32 %v1113, %v1120
    %v1122 = vadd.f32 %v1114, %v1119
    %1123 = vrot.lane.b32.xlu0 %v1121, 64
    %v1124 = vpop.permute.xlu0 %1123
    %1125 = vrot.lane.b32.xlu0 %v1122, 64
    %v1126 = vpop.permute.xlu0 %1125
    %v1127 = vsel %vm311, %v1124, %v1126
    %v1128 = vsel %vm311, %v1126, %v1124
    %v1129 = vadd.f32 %v1121, %v1128
    %v1130 = vadd.f32 %v1122, %v1127
    %v1131 = vadd.f32 %v1129, %v1130
    %v1132 = vmul.f32 %v1131, 0.0078125
    %v1133 = vmul.f32 %v1132, %v1132
    %v1135 = vrot.slane %v1133, 7
    %v1137 = vsub.f32 %v1132, %v1135
    %v1138 = vmax.f32 %v1137, 0.0
    %v1139 = vadd.f32 %v1138, 1e-05
    %v1140 = vrsqrt.pop %v1139
    %v1142 = vcombine.low %v1140, %v1140
    %v1144 = vmul.f32 %v731, %v1142
    %v1146 = vlaneseq
    %v1147 = vshrl.u32 %v1146, 7
    %v1148 = vsub.s32 1, %v1147
    %v1149 = vrot.slane %v1144, %v1148
    %v1150 = vlaneseq
    %v1151 = vshrl.u32 %v1150, 7
    %v1152 = vsub.s32 5, %v1151
    %v1153 = vrot.slane %v1144, %v1152
    %v1156 = vmul.f32 %v1132, %v1149
    %v1157 = vmul.f32 %v1132, %v1153
    %v1160 = vcombine.low %v1156, %v1157
    %v1161 = vrot.slane %v1160, 6
    %v1163 = vsub.f32 %v731, %v1161
    %v1164 = vlaneseq
    %v1165 = vshrl.u32 %v1164, 7
    %v1166 = vsub.s32 1, %v1165
    %v1167 = vrot.slane %v1149, %v1166
    %v1168 = vlaneseq
    %v1169 = vshrl.u32 %v1168, 7
    %v1170 = vsub.s32 1, %v1169
    %v1171 = vrot.slane %v1153, %v1170
    %v1172 = vmul.f32 %v1077, %v1167
    %v1173 = vmul.f32 %v1078, %v1171
    %v1174 = vmul.f32 %v1079, %v1167
    %v1175 = vmul.f32 %v1080, %v1171
    %v1177 = vlaneseq
    %v1178 = vshrl.u32 %v1177, 7
    %v1179 = vsub.s32 2, %v1178
    %v1180 = vrot.slane %v1163, %v1179
    %v1181 = vlaneseq
    %v1182 = vshrl.u32 %v1181, 7
    %v1183 = vsub.s32 6, %v1182
    %v1184 = vrot.slane %v1163, %v1183
    %v1187 = vlaneseq
    %v1188 = vshrl.u32 %v1187, 7
    %v1189 = vsub.s32 2, %v1188
    %v1190 = vrot.slane %v1180, %v1189
    %v1191 = vlaneseq
    %v1192 = vshrl.u32 %v1191, 7
    %v1193 = vsub.s32 2, %v1192
    %v1194 = vrot.slane %v1184, %v1193
    %v1195 = vadd.f32 %v1172, %v1190
    %v1196 = vadd.f32 %v1173, %v1194
    %v1197 = vadd.f32 %v1174, %v1190
    %v1198 = vadd.f32 %v1175, %v1194
    %v1199 = vrot.slane %v1195, 1
    %v1200 = vrot.slane %v1196, 1
    %v1201 = vrot.slane %v1197, 1
    %v1202 = vrot.slane %v1198, 1
    %v1203 = vsel %vm63, %v1199, %v1201
    %v1204 = vsel %vm63, %v1200, %v1202
    %v1205 = vsel %vm63, %v1201, %v1199
    %v1206 = vsel %vm63, %v1202, %v1200
    %v1207 = vmax.f32 %v1195, %v1203
    %v1208 = vmax.f32 %v1196, %v1204
    %v1209 = vmax.f32 %v1197, %v1205
    %v1210 = vmax.f32 %v1198, %v1206
    %v1211 = vld [vmem:[%s3] sm:$0xf]
    %v1212 = vpack.c.bf16 %v1209, %v1207
    %v1213 = vpack.c.bf16 %v1210, %v1208
    %v1215 = vsel %vm104, %v1211, 0
    %1217 = vmatprep.subr.bf16.mxu0 %v1213
    %1218 = vmatpush1.bf16.msra.mxu0 %v1212
    %1219 = vmatprep.subr.bf16.mxu0 0
    %1220 = vmatpush1.bf16.msra.mxu0 0
    %1221 = vmatprep.subr.bf16.mxu0 0
    %1222 = vmatpush1.bf16.msra.mxu0 0
    %1223 = vmatprep.subr.bf16.mxu0 0
    %1224 = vmatpush1.bf16.msra.mxu0 0
    %1225 = vmatprep.subr.bf16.mxu0 0
    %1226 = vmatpush1.bf16.msra.mxu0 0
    %1227 = vmatprep.subr.bf16.mxu0 0
    %1228 = vmatpush1.bf16.msra.mxu0 0
    %1229 = vmatprep.subr.bf16.mxu0 0
    %1230 = vmatpush1.bf16.msra.mxu0 0
    %1231 = vmatprep.subr.bf16.mxu0 0
    %1232 = vmatpush1.bf16.msra.mxu0 0
    %1233 = vmatprep.subr.bf16.mxu0 0
    %1234 = vmatpush1.bf16.msra.mxu0 0
    %1235 = vmatprep.subr.bf16.mxu0 0
    %1236 = vmatpush1.bf16.msra.mxu0 0
    %1237 = vmatprep.subr.bf16.mxu0 0
    %1238 = vmatpush1.bf16.msra.mxu0 0
    %1239 = vmatprep.subr.bf16.mxu0 0
    %1240 = vmatpush1.bf16.msra.mxu0 0
    %1241 = vmatprep.subr.bf16.mxu0 0
    %1242 = vmatpush1.bf16.msra.mxu0 0
    %1243 = vmatprep.subr.bf16.mxu0 0
    %1244 = vmatpush1.bf16.msra.mxu0 0
    %1245 = vmatprep.subr.bf16.mxu0 0
    %1246 = vmatpush1.bf16.msra.mxu0 0
    %1247 = vmatprep.subr.bf16.mxu0 0
    %1248 = vmatpush1.bf16.msra.mxu0 0
    %1249 = vmatprep.mubr.bf16.mxu0 0
    %1250 = vmatmul.mubr.bf16.gmra.mrb[0].mxu0 %v1215
    %v1251 = vpop.f32.mrb[0].mxu0
    %v1252 = vadd.f32 0.0, %v1251
    %v1253 = vpop.f32.mrb[0].mxu0
    %v1254 = vadd.f32 0.0, %v1253
    %v1255 = vpop.f32.mrb[0].mxu0
    %v1256 = vpop.f32.mrb[0].mxu0
    %1257 = vdwg.mxu0
    %1258 = vrot.lane.b32.xlu0 %v1252, 96
    %v1259 = vpop.permute.xlu0 %1258
    %1260 = vrot.lane.b32.xlu0 %v1254, 96
    %v1261 = vpop.permute.xlu0 %1260
    %vm1262 = vcmp.lt.s32.totalorder %v292, 96
    %v1263 = vsel %vm1262, %v1259, %v1261
    %v1264 = vsel %vm1262, %v1261, %v1259
    %v1265 = vmax.f32 %v1252, %v1263
    %v1266 = vmax.f32 %v1254, %v1264
    %v1267 = vpack.c.bf16 %v1265, %v1265
    %v1268 = vpack.c.bf16 %v1266, %v1266
    %s1269 = scalar_lea.vmem %s2, 128
    %v1270 = vld [vmem:[%s1269] sm:$0xf]
    %v1271 = vld [vmem:[%s1269 + $0x4] sm:$0xf]
    %v1272 = vld [vmem:[%s1269 + $0x8] sm:$0xf]
    %v1273 = vld [vmem:[%s1269 + $0xc] sm:$0xf]
    %v1274 = vld [vmem:[%s1269 + $0x10] sm:$0xf]
    %v1275 = vld [vmem:[%s1269 + $0x14] sm:$0xf]
    %v1276 = vld [vmem:[%s1269 + $0x18] sm:$0xf]
    %v1277 = vld [vmem:[%s1269 + $0x1c] sm:$0xf]
    %v1278 = vld [vmem:[%s1269 + $0x20] sm:$0xf]
    %v1279 = vld [vmem:[%s1269 + $0x24] sm:$0xf]
    %v1280 = vld [vmem:[%s1269 + $0x28] sm:$0xf]
    %v1281 = vld [vmem:[%s1269 + $0x2c] sm:$0xf]
    %v1282 = vld [vmem:[%s1269 + $0x30] sm:$0xf]
    %v1283 = vld [vmem:[%s1269 + $0x34] sm:$0xf]
    %v1284 = vld [vmem:[%s1269 + $0x38] sm:$0xf]
    %v1285 = vld [vmem:[%s1269 + $0x3c] sm:$0xf]
    %v1286 = vld [vmem:[%s1269 + $0x40] sm:$0xf]
    %v1287 = vld [vmem:[%s1269 + $0x44] sm:$0xf]
    %v1288 = vld [vmem:[%s1269 + $0x48] sm:$0xf]
    %v1289 = vld [vmem:[%s1269 + $0x4c] sm:$0xf]
    %v1290 = vld [vmem:[%s1269 + $0x50] sm:$0xf]
    %v1291 = vld [vmem:[%s1269 + $0x54] sm:$0xf]
    %v1292 = vld [vmem:[%s1269 + $0x58] sm:$0xf]
    %v1293 = vld [vmem:[%s1269 + $0x5c] sm:$0xf]
    %v1294 = vld [vmem:[%s1269 + $0x60] sm:$0xf]
    %v1295 = vld [vmem:[%s1269 + $0x64] sm:$0xf]
    %v1296 = vld [vmem:[%s1269 + $0x68] sm:$0xf]
    %v1297 = vld [vmem:[%s1269 + $0x6c] sm:$0xf]
    %v1298 = vld [vmem:[%s1269 + $0x70] sm:$0xf]
    %v1299 = vld [vmem:[%s1269 + $0x74] sm:$0xf]
    %v1300 = vld [vmem:[%s1269 + $0x78] sm:$0xf]
    %v1301 = vld [vmem:[%s1269 + $0x7c] sm:$0xf]
    %v1334 = vunpack.c.l.b16 %v1270
    %v1335 = vunpack.c.l.b16 %v1271
    %v1336 = vunpack.c.l.b16 %v1272
    %v1337 = vunpack.c.l.b16 %v1273
    %v1338 = vunpack.c.l.b16 %v1274
    %v1339 = vunpack.c.l.b16 %v1275
    %v1340 = vunpack.c.l.b16 %v1276
    %v1341 = vunpack.c.l.b16 %v1277
    %v1342 = vunpack.c.l.b16 %v1278
    %v1343 = vunpack.c.l.b16 %v1279
    %v1344 = vunpack.c.l.b16 %v1280
    %v1345 = vunpack.c.l.b16 %v1281
    %v1346 = vunpack.c.l.b16 %v1282
    %v1347 = vunpack.c.l.b16 %v1283
    %v1348 = vunpack.c.l.b16 %v1284
    %v1349 = vunpack.c.l.b16 %v1285
    %v1350 = vunpack.c.l.b16 %v1286
    %v1351 = vunpack.c.l.b16 %v1287
    %v1352 = vunpack.c.l.b16 %v1288
    %v1353 = vunpack.c.l.b16 %v1289
    %v1354 = vunpack.c.l.b16 %v1290
    %v1355 = vunpack.c.l.b16 %v1291
    %v1356 = vunpack.c.l.b16 %v1292
    %v1357 = vunpack.c.l.b16 %v1293
    %v1358 = vunpack.c.l.b16 %v1294
    %v1359 = vunpack.c.l.b16 %v1295
    %v1360 = vunpack.c.l.b16 %v1296
    %v1361 = vunpack.c.l.b16 %v1297
    %v1362 = vunpack.c.l.b16 %v1298
    %v1363 = vunpack.c.l.b16 %v1299
    %v1364 = vunpack.c.l.b16 %v1300
    %v1365 = vunpack.c.l.b16 %v1301
    %v1366 = vpack.c.b16 %v1335, %v1334
    %v1367 = vpack.c.b16 %v1337, %v1336
    %v1368 = vpack.c.b16 %v1339, %v1338
    %v1369 = vpack.c.b16 %v1341, %v1340
    %v1370 = vpack.c.b16 %v1343, %v1342
    %v1371 = vpack.c.b16 %v1345, %v1344
    %v1372 = vpack.c.b16 %v1347, %v1346
    %v1373 = vpack.c.b16 %v1349, %v1348
    %v1374 = vpack.c.b16 %v1351, %v1350
    %v1375 = vpack.c.b16 %v1353, %v1352
    %v1376 = vpack.c.b16 %v1355, %v1354
    %v1377 = vpack.c.b16 %v1357, %v1356
    %v1378 = vpack.c.b16 %v1359, %v1358
    %v1379 = vpack.c.b16 %v1361, %v1360
    %v1380 = vpack.c.b16 %v1363, %v1362
    %v1381 = vpack.c.b16 %v1365, %v1364
    %1398 = vmatprep.subr.bf16.mxu0 0
    %1399 = vmatpush1.bf16.msra.mxu0 %v1366
    %1400 = vmatprep.subr.bf16.mxu0 0
    %1401 = vmatpush1.bf16.msra.mxu0 %v1367
    %1402 = vmatprep.subr.bf16.mxu0 0
    %1403 = vmatpush1.bf16.msra.mxu0 %v1368
    %1404 = vmatprep.subr.bf16.mxu0 0
    %1405 = vmatpush1.bf16.msra.mxu0 %v1369
    %1406 = vmatprep.subr.bf16.mxu0 0
    %1407 = vmatpush1.bf16.msra.mxu0 %v1370
    %1408 = vmatprep.subr.bf16.mxu0 0
    %1409 = vmatpush1.bf16.msra.mxu0 %v1371
    %1410 = vmatprep.subr.bf16.mxu0 0
    %1411 = vmatpush1.bf16.msra.mxu0 %v1372
    %1412 = vmatprep.subr.bf16.mxu0 0
    %1413 = vmatpush1.bf16.msra.mxu0 %v1373
    %1414 = vmatprep.subr.bf16.mxu0 0
    %1415 = vmatpush1.bf16.msra.mxu0 %v1374
    %1416 = vmatprep.subr.bf16.mxu0 0
    %1417 = vmatpush1.bf16.msra.mxu0 %v1375
    %1418 = vmatprep.subr.bf16.mxu0 0
    %1419 = vmatpush1.bf16.msra.mxu0 %v1376
    %1420 = vmatprep.subr.bf16.mxu0 0
    %1421 = vmatpush1.bf16.msra.mxu0 %v1377
    %1422 = vmatprep.subr.bf16.mxu0 0
    %1423 = vmatpush1.bf16.msra.mxu0 %v1378
    %1424 = vmatprep.subr.bf16.mxu0 0
    %1425 = vmatpush1.bf16.msra.mxu0 %v1379
    %1426 = vmatprep.subr.bf16.mxu0 0
    %1427 = vmatpush1.bf16.msra.mxu0 %v1380
    %1428 = vmatprep.subr.bf16.mxu0 0
    %1429 = vmatpush1.bf16.msra.mxu0 %v1381
    %1430 = vmatprep.mubr.bf16.mxu0 %v1268
    %1431 = vmatmul.mubr.bf16.gmra.mrb[0].mxu0 %v1267
    %v1432 = vpop.f32.mrb[0].mxu0
    %v1433 = vadd.f32 0.0, %v1432
    %v1434 = vpop.f32.mrb[0].mxu0
    %v1435 = vpop.f32.mrb[0].mxu0
    %v1436 = vpop.f32.mrb[0].mxu0
    %1437 = vdwg.mxu0
    %v1438 = vand.u32 %v30, 3
    %vm1439 = vcmp.eq.s32.totalorder %v1438, 0
    %v1440 = vrot.slane %v1433, 3
    %v1441 = vrot.slane %v1433, 7
    %v1442 = vsel %vm1439, %v1440, %v1441
    %vm1443 = vcmp.eq.s32.totalorder %v1438, 3
    %v1444 = vrot.slane %v1433, 5
    %v1445 = vrot.slane %v1433, 1
    %v1446 = vsel %vm1443, %v1444, %v1445
    %v1447 = vpack.c.bf16 %v1442, %v1442
    %v1448 = vpack.c.bf16 %v1433, %v1433
    %v1449 = vpack.c.bf16 %v1446, %v1446
    %v1450 = vld [vmem:[%s1 + $0x1b0] sm:$0xff]
    %v1451 = vld [vmem:[%s1 + $0x1b8] sm:$0xff]
    %v1452 = vld [vmem:[%s1 + $0x1c0] sm:$0xff]
    %v1453 = vld [vmem:[%s1 + $0x1c8] sm:$0xff]
    %v1454 = vld [vmem:[%s1 + $0x1d0] sm:$0xff]
    %v1455 = vld [vmem:[%s1 + $0x1d8] sm:$0xff]
    %v1456 = vld [vmem:[%s1 + $0x1e0] sm:$0xff]
    %v1457 = vld [vmem:[%s1 + $0x1e8] sm:$0xff]
    %v1458 = vld [vmem:[%s1 + $0x1f0] sm:$0xff]
    %v1459 = vld [vmem:[%s1 + $0x1f8] sm:$0xff]
    %v1460 = vld [vmem:[%s1 + $0x200] sm:$0xff]
    %v1461 = vld [vmem:[%s1 + $0x208] sm:$0xff]
    %v1462 = vld [vmem:[%s1 + $0x210] sm:$0xff]
    %v1463 = vld [vmem:[%s1 + $0x218] sm:$0xff]
    %v1464 = vld [vmem:[%s1 + $0x220] sm:$0xff]
    %v1465 = vld [vmem:[%s1 + $0x228] sm:$0xff]
    %v1466 = vld [vmem:[%s1 + $0x230] sm:$0xff]
    %v1467 = vld [vmem:[%s1 + $0x238] sm:$0xff]
    %v1468 = vld [vmem:[%s1 + $0x240] sm:$0xff]
    %v1469 = vld [vmem:[%s1 + $0x248] sm:$0xff]
    %v1470 = vld [vmem:[%s1 + $0x250] sm:$0xff]
    %v1471 = vld [vmem:[%s1 + $0x258] sm:$0xff]
    %v1472 = vld [vmem:[%s1 + $0x260] sm:$0xff]
    %v1473 = vld [vmem:[%s1 + $0x268] sm:$0xff]
    %v1474 = vld [vmem:[%s1 + $0x270] sm:$0xff]
    %v1475 = vld [vmem:[%s1 + $0x278] sm:$0xff]
    %v1476 = vld [vmem:[%s1 + $0x280] sm:$0xff]
    %v1477 = vld [vmem:[%s1 + $0x288] sm:$0xff]
    %v1478 = vld [vmem:[%s1 + $0x290] sm:$0xff]
    %v1479 = vld [vmem:[%s1 + $0x298] sm:$0xff]
    %v1480 = vld [vmem:[%s1 + $0x2a0] sm:$0xff]
    %v1481 = vld [vmem:[%s1 + $0x2a8] sm:$0xff]
    %v1482 = vld [vmem:[%s1 + $0x2b0] sm:$0xff]
    %v1483 = vld [vmem:[%s1 + $0x2b8] sm:$0xff]
    %v1484 = vld [vmem:[%s1 + $0x2c0] sm:$0xff]
    %v1485 = vld [vmem:[%s1 + $0x2c8] sm:$0xff]
    %v1486 = vld [vmem:[%s1 + $0x2d0] sm:$0xff]
    %v1487 = vld [vmem:[%s1 + $0x2d8] sm:$0xff]
    %v1488 = vld [vmem:[%s1 + $0x2e0] sm:$0xff]
    %v1489 = vld [vmem:[%s1 + $0x2e8] sm:$0xff]
    %v1490 = vld [vmem:[%s1 + $0x2f0] sm:$0xff]
    %v1491 = vld [vmem:[%s1 + $0x2f8] sm:$0xff]
    %v1492 = vld [vmem:[%s1 + $0x300] sm:$0xff]
    %v1493 = vld [vmem:[%s1 + $0x308] sm:$0xff]
    %v1494 = vld [vmem:[%s1 + $0x310] sm:$0xff]
    %v1495 = vld [vmem:[%s1 + $0x318] sm:$0xff]
    %v1496 = vld [vmem:[%s1 + $0x320] sm:$0xff]
    %v1497 = vld [vmem:[%s1 + $0x328] sm:$0xff]
    %s1498 = scalar_lea.vmem %s4, 16
    %v1499 = vld [vmem:[%s1498] sm:$0x77]
    %v1501 = vlaneseq
    %v1502 = vshrl.u32 %v1501, 7
    %v1503 = vsub.s32 0, %v1502
    %v1504 = vrot.slane %v1499, %v1503
    %v1505 = vlaneseq
    %v1506 = vshrl.u32 %v1505, 7
    %v1507 = vsub.s32 4, %v1506
    %v1508 = vrot.slane %v1499, %v1507
    %v1511 = vlaneseq
    %v1512 = vshrl.u32 %v1511, 7
    %v1513 = vsub.s32 0, %v1512
    %v1514 = vrot.slane %v1504, %v1513
    %v1515 = vlaneseq
    %v1516 = vshrl.u32 %v1515, 7
    %v1517 = vsub.s32 0, %v1516
    %v1518 = vrot.slane %v1508, %v1517
    %v1567 = vunpack.c.l.b16 %v1450
    %v1568 = vunpack.c.h.b16 %v1450
    %v1569 = vunpack.c.l.b16 %v1451
    %v1570 = vunpack.c.h.b16 %v1451
    %v1571 = vunpack.c.l.b16 %v1452
    %v1572 = vunpack.c.h.b16 %v1452
    %v1573 = vunpack.c.l.b16 %v1453
    %v1574 = vunpack.c.h.b16 %v1453
    %v1575 = vunpack.c.l.b16 %v1454
    %v1576 = vunpack.c.h.b16 %v1454
    %v1577 = vunpack.c.l.b16 %v1455
    %v1578 = vunpack.c.h.b16 %v1455
    %v1579 = vunpack.c.l.b16 %v1456
    %v1580 = vunpack.c.h.b16 %v1456
    %v1581 = vunpack.c.l.b16 %v1457
    %v1582 = vunpack.c.h.b16 %v1457
    %v1583 = vunpack.c.l.b16 %v1458
    %v1584 = vunpack.c.h.b16 %v1458
    %v1585 = vunpack.c.l.b16 %v1459
    %v1586 = vunpack.c.h.b16 %v1459
    %v1587 = vunpack.c.l.b16 %v1460
    %v1588 = vunpack.c.h.b16 %v1460
    %v1589 = vunpack.c.l.b16 %v1461
    %v1590 = vunpack.c.h.b16 %v1461
    %v1591 = vunpack.c.l.b16 %v1462
    %v1592 = vunpack.c.h.b16 %v1462
    %v1593 = vunpack.c.l.b16 %v1463
    %v1594 = vunpack.c.h.b16 %v1463
    %v1595 = vunpack.c.l.b16 %v1464
    %v1596 = vunpack.c.h.b16 %v1464
    %v1597 = vunpack.c.l.b16 %v1465
    %v1598 = vunpack.c.h.b16 %v1465
    %v1599 = vunpack.c.l.b16 %v1466
    %v1600 = vunpack.c.h.b16 %v1466
    %v1601 = vunpack.c.l.b16 %v1467
    %v1602 = vunpack.c.h.b16 %v1467
    %v1603 = vunpack.c.l.b16 %v1468
    %v1604 = vunpack.c.h.b16 %v1468
    %v1605 = vunpack.c.l.b16 %v1469
    %v1606 = vunpack.c.h.b16 %v1469
    %v1607 = vunpack.c.l.b16 %v1470
    %v1608 = vunpack.c.h.b16 %v1470
    %v1609 = vunpack.c.l.b16 %v1471
    %v1610 = vunpack.c.h.b16 %v1471
    %v1611 = vunpack.c.l.b16 %v1472
    %v1612 = vunpack.c.h.b16 %v1472
    %v1613 = vunpack.c.l.b16 %v1473
    %v1614 = vunpack.c.h.b16 %v1473
    %v1615 = vunpack.c.l.b16 %v1474
    %v1616 = vunpack.c.h.b16 %v1474
    %v1617 = vunpack.c.l.b16 %v1475
    %v1618 = vunpack.c.h.b16 %v1475
    %v1619 = vunpack.c.l.b16 %v1476
    %v1620 = vunpack.c.h.b16 %v1476
    %v1621 = vunpack.c.l.b16 %v1477
    %v1622 = vunpack.c.h.b16 %v1477
    %v1623 = vunpack.c.l.b16 %v1478
    %v1624 = vunpack.c.h.b16 %v1478
    %v1625 = vunpack.c.l.b16 %v1479
    %v1626 = vunpack.c.h.b16 %v1479
    %v1627 = vunpack.c.l.b16 %v1480
    %v1628 = vunpack.c.h.b16 %v1480
    %v1629 = vunpack.c.l.b16 %v1481
    %v1630 = vunpack.c.h.b16 %v1481
    %v1631 = vunpack.c.l.b16 %v1482
    %v1632 = vunpack.c.h.b16 %v1482
    %v1633 = vunpack.c.l.b16 %v1483
    %v1634 = vunpack.c.h.b16 %v1483
    %v1635 = vunpack.c.l.b16 %v1484
    %v1636 = vunpack.c.h.b16 %v1484
    %v1637 = vunpack.c.l.b16 %v1485
    %v1638 = vunpack.c.h.b16 %v1485
    %v1639 = vunpack.c.l.b16 %v1486
    %v1640 = vunpack.c.h.b16 %v1486
    %v1641 = vunpack.c.l.b16 %v1487
    %v1642 = vunpack.c.h.b16 %v1487
    %v1643 = vunpack.c.l.b16 %v1488
    %v1644 = vunpack.c.h.b16 %v1488
    %v1645 = vunpack.c.l.b16 %v1489
    %v1646 = vunpack.c.h.b16 %v1489
    %v1647 = vunpack.c.l.b16 %v1490
    %v1648 = vunpack.c.h.b16 %v1490
    %v1649 = vunpack.c.l.b16 %v1491
    %v1650 = vunpack.c.h.b16 %v1491
    %v1651 = vunpack.c.l.b16 %v1492
    %v1652 = vunpack.c.h.b16 %v1492
    %v1653 = vunpack.c.l.b16 %v1493
    %v1654 = vunpack.c.h.b16 %v1493
    %v1655 = vunpack.c.l.b16 %v1494
    %v1656 = vunpack.c.h.b16 %v1494
    %v1657 = vunpack.c.l.b16 %v1495
    %v1658 = vunpack.c.h.b16 %v1495
    %v1659 = vunpack.c.l.b16 %v1496
    %v1660 = vunpack.c.h.b16 %v1496
    %v1661 = vunpack.c.l.b16 %v1497
    %v1662 = vunpack.c.h.b16 %v1497
    %v1663 = vpack.c.b16 %v1569, %v1567
    %v1664 = vpack.c.b16 %v1570, %v1568
    %v1665 = vpack.c.b16 %v1573, %v1571
    %v1666 = vpack.c.b16 %v1574, %v1572
    %v1667 = vpack.c.b16 %v1577, %v1575
    %v1668 = vpack.c.b16 %v1578, %v1576
    %v1669 = vpack.c.b16 %v1581, %v1579
    %v1670 = vpack.c.b16 %v1582, %v1580
    %v1671 = vpack.c.b16 %v1585, %v1583
    %v1672 = vpack.c.b16 %v1586, %v1584
    %v1673 = vpack.c.b16 %v1589, %v1587
    %v1674 = vpack.c.b16 %v1590, %v1588
    %v1675 = vpack.c.b16 %v1593, %v1591
    %v1676 = vpack.c.b16 %v1594, %v1592
    %v1677 = vpack.c.b16 %v1597, %v1595
    %v1678 = vpack.c.b16 %v1598, %v1596
    %v1679 = vpack.c.b16 %v1601, %v1599
    %v1680 = vpack.c.b16 %v1602, %v1600
    %v1681 = vpack.c.b16 %v1605, %v1603
    %v1682 = vpack.c.b16 %v1606, %v1604
    %v1683 = vpack.c.b16 %v1609, %v1607
    %v1684 = vpack.c.b16 %v1610, %v1608
    %v1685 = vpack.c.b16 %v1613, %v1611
    %v1686 = vpack.c.b16 %v1614, %v1612
    %v1687 = vpack.c.b16 %v1617, %v1615
    %v1688 = vpack.c.b16 %v1618, %v1616
    %v1689 = vpack.c.b16 %v1621, %v1619
    %v1690 = vpack.c.b16 %v1622, %v1620
    %v1691 = vpack.c.b16 %v1625, %v1623
    %v1692 = vpack.c.b16 %v1626, %v1624
    %v1693 = vpack.c.b16 %v1629, %v1627
    %v1694 = vpack.c.b16 %v1630, %v1628
    %v1695 = vpack.c.b16 %v1633, %v1631
    %v1696 = vpack.c.b16 %v1634, %v1632
    %v1697 = vpack.c.b16 %v1637, %v1635
    %v1698 = vpack.c.b16 %v1638, %v1636
    %v1699 = vpack.c.b16 %v1641, %v1639
    %v1700 = vpack.c.b16 %v1642, %v1640
    %v1701 = vpack.c.b16 %v1645, %v1643
    %v1702 = vpack.c.b16 %v1646, %v1644
    %v1703 = vpack.c.b16 %v1649, %v1647
    %v1704 = vpack.c.b16 %v1650, %v1648
    %v1705 = vpack.c.b16 %v1653, %v1651
    %v1706 = vpack.c.b16 %v1654, %v1652
    %v1707 = vpack.c.b16 %v1657, %v1655
    %v1708 = vpack.c.b16 %v1658, %v1656
    %v1709 = vpack.c.b16 %v1661, %v1659
    %v1710 = vpack.c.b16 %v1662, %v1660
    %1759 = vmatprep.subr.bf16.mxu0 %v1664
    %1760 = vmatpush1.bf16.msra.mxu0 %v1663
    %1761 = vmatprep.subr.bf16.mxu0 %v1666
    %1762 = vmatpush1.bf16.msra.mxu0 %v1665
    %1763 = vmatprep.subr.bf16.mxu0 %v1668
    %1764 = vmatpush1.bf16.msra.mxu0 %v1667
    %1765 = vmatprep.subr.bf16.mxu0 %v1670
    %1766 = vmatpush1.bf16.msra.mxu0 %v1669
    %1767 = vmatprep.subr.bf16.mxu0 %v1672
    %1768 = vmatpush1.bf16.msra.mxu0 %v1671
    %1769 = vmatprep.subr.bf16.mxu0 %v1674
    %1770 = vmatpush1.bf16.msra.mxu0 %v1673
    %1771 = vmatprep.subr.bf16.mxu0 %v1676
    %1772 = vmatpush1.bf16.msra.mxu0 %v1675
    %1773 = vmatprep.subr.bf16.mxu0 %v1678
    %1774 = vmatpush1.bf16.msra.mxu0 %v1677
    %1775 = vmatprep.subr.bf16.mxu0 %v1680
    %1776 = vmatpush1.bf16.msra.mxu0 %v1679
    %1777 = vmatprep.subr.bf16.mxu0 %v1682
    %1778 = vmatpush1.bf16.msra.mxu0 %v1681
    %1779 = vmatprep.subr.bf16.mxu0 %v1684
    %1780 = vmatpush1.bf16.msra.mxu0 %v1683
    %1781 = vmatprep.subr.bf16.mxu0 %v1686
    %1782 = vmatpush1.bf16.msra.mxu0 %v1685
    %1783 = vmatprep.subr.bf16.mxu0 %v1688
    %1784 = vmatpush1.bf16.msra.mxu0 %v1687
    %1785 = vmatprep.subr.bf16.mxu0 %v1690
    %1786 = vmatpush1.bf16.msra.mxu0 %v1689
    %1787 = vmatprep.subr.bf16.mxu0 %v1692
    %1788 = vmatpush1.bf16.msra.mxu0 %v1691
    %1789 = vmatprep.subr.bf16.mxu0 %v1694
    %1790 = vmatpush1.bf16.msra.mxu0 %v1693
    %1791 = vmatprep.mubr.bf16.mxu0 %v1448
    %1792 = vmatmul.mubr.bf16.gmra.mrb[0].mxu0 %v1447
    %v1793 = vpop.f32.mrb[0].mxu0
    %v1794 = vadd.f32 %v1514, %v1793
    %v1795 = vpop.f32.mrb[0].mxu0
    %v1796 = vadd.f32 %v1518, %v1795
    %v1797 = vpop.f32.mrb[0].mxu0
    %v1798 = vpop.f32.mrb[0].mxu0
    %1799 = vdwg.mxu0
    %1800 = vmatprep.subr.bf16.mxu0 %v1696
    %1801 = vmatpush1.bf16.msra.mxu0 %v1695
    %1802 = vmatprep.subr.bf16.mxu0 %v1698
    %1803 = vmatpush1.bf16.msra.mxu0 %v1697
    %1804 = vmatprep.subr.bf16.mxu0 %v1700
    %1805 = vmatpush1.bf16.msra.mxu0 %v1699
    %1806 = vmatprep.subr.bf16.mxu0 %v1702
    %1807 = vmatpush1.bf16.msra.mxu0 %v1701
    %1808 = vmatprep.subr.bf16.mxu0 %v1704
    %1809 = vmatpush1.bf16.msra.mxu0 %v1703
    %1810 = vmatprep.subr.bf16.mxu0 %v1706
    %1811 = vmatpush1.bf16.msra.mxu0 %v1705
    %1812 = vmatprep.subr.bf16.mxu0 %v1708
    %1813 = vmatpush1.bf16.msra.mxu0 %v1707
    %1814 = vmatprep.subr.bf16.mxu0 %v1710
    %1815 = vmatpush1.bf16.msra.mxu0 %v1709
    %1816 = vmatprep.subr.bf16.mxu0 0
    %1817 = vmatpush1.bf16.msra.mxu0 0
    %1818 = vmatprep.subr.bf16.mxu0 0
    %1819 = vmatpush1.bf16.msra.mxu0 0
    %1820 = vmatprep.subr.bf16.mxu0 0
    %1821 = vmatpush1.bf16.msra.mxu0 0
    %1822 = vmatprep.subr.bf16.mxu0 0
    %1823 = vmatpush1.bf16.msra.mxu0 0
    %1824 = vmatprep.subr.bf16.mxu0 0
    %1825 = vmatpush1.bf16.msra.mxu0 0
    %1826 = vmatprep.subr.bf16.mxu0 0
    %1827 = vmatpush1.bf16.msra.mxu0 0
    %1828 = vmatprep.subr.bf16.mxu0 0
    %1829 = vmatpush1.bf16.msra.mxu0 0
    %1830 = vmatprep.subr.bf16.mxu0 0
    %1831 = vmatpush1.bf16.msra.mxu0 0
    %1832 = vmatprep.mubr.bf16.mxu0 0
    %1833 = vmatmul.mubr.bf16.gmra.mrb[0].mxu0 %v1449
    %v1834 = vpop.f32.mrb[0].mxu0
    %v1835 = vadd.f32 %v1794, %v1834
    %v1836 = vpop.f32.mrb[0].mxu0
    %v1837 = vadd.f32 %v1796, %v1836
    %v1838 = vpop.f32.mrb[0].mxu0
    %v1839 = vpop.f32.mrb[0].mxu0
    %1840 = vdwg.mxu0
    %v1841 = vmax.f32 %v1835, 0.0
    %v1842 = vmax.f32 %v1837, 0.0
    %v1843 = vrot.slane %v1841, 4
    %v1844 = vadd.f32 %v1841, %v1843
    %v1845 = vrot.slane %v1844, 2
    %v1846 = vadd.f32 %v1844, %v1845
    %v1847 = vrot.slane %v1846, 1
    %v1848 = vadd.f32 %v1846, %v1847
    %v1849 = vrot.slane %v1842, 4
    %v1850 = vadd.f32 %v1842, %v1849
    %v1851 = vrot.slane %v1850, 2
    %v1852 = vadd.f32 %v1850, %v1851
    %v1853 = vrot.slane %v1852, 1
    %v1854 = vadd.f32 %v1852, %v1853
    %v1855 = vmul.f32 %v1841, %v1841
    %v1856 = vmul.f32 %v1842, %v1842
    %v1857 = vrot.slane %v1855, 4
    %v1858 = vadd.f32 %v1855, %v1857
    %v1859 = vrot.slane %v1858, 2
    %v1860 = vadd.f32 %v1858, %v1859
    %v1861 = vrot.slane %v1860, 1
    %v1862 = vadd.f32 %v1860, %v1861
    %v1863 = vrot.slane %v1856, 4
    %v1864 = vadd.f32 %v1856, %v1863
    %v1865 = vrot.slane %v1864, 2
    %v1866 = vadd.f32 %v1864, %v1865
    %v1867 = vrot.slane %v1866, 1
    %v1868 = vadd.f32 %v1866, %v1867
    %v1869 = vsel %vm284, %v1848, %v1862
    %v1870 = vsel %vm284, %v1854, %v1868
    %1871 = vrot.lane.b32.xlu0 %v1869, 64
    %v1872 = vpop.permute.xlu0 %1871
    %1873 = vrot.lane.b32.xlu0 %v1870, 64
    %v1874 = vpop.permute.xlu0 %1873
    %v1875 = vsel %vm311, %v1872, %v1874
    %v1876 = vsel %vm311, %v1874, %v1872
    %v1877 = vadd.f32 %v1869, %v1876
    %v1878 = vadd.f32 %v1870, %v1875
    %v1879 = vadd.f32 %v1877, %v1878
    %v1880 = vmul.f32 %v1879, 0.03125
    %v1881 = vmul.f32 %v1880, %v1880
    %v1883 = vrot.slane %v1881, 7
    %v1885 = vsub.f32 %v1880, %v1883
    %v1886 = vmax.f32 %v1885, 0.0
    %v1887 = vadd.f32 %v1886, 1e-05
    %v1888 = vrsqrt.pop %v1887
    %v1890 = vcombine.low %v1888, %v1888
    %v1892 = vmul.f32 %v1499, %v1890
    %v1894 = vlaneseq
    %v1895 = vshrl.u32 %v1894, 7
    %v1896 = vsub.s32 1, %v1895
    %v1897 = vrot.slane %v1892, %v1896
    %v1898 = vlaneseq
    %v1899 = vshrl.u32 %v1898, 7
    %v1900 = vsub.s32 5, %v1899
    %v1901 = vrot.slane %v1892, %v1900
    %v1904 = vmul.f32 %v1880, %v1897
    %v1905 = vmul.f32 %v1880, %v1901
    %v1908 = vcombine.low %v1904, %v1905
    %v1909 = vrot.slane %v1908, 6
    %v1911 = vsub.f32 %v1499, %v1909
    %v1912 = vlaneseq
    %v1913 = vshrl.u32 %v1912, 7
    %v1914 = vsub.s32 1, %v1913
    %v1915 = vrot.slane %v1897, %v1914
    %v1916 = vlaneseq
    %v1917 = vshrl.u32 %v1916, 7
    %v1918 = vsub.s32 1, %v1917
    %v1919 = vrot.slane %v1901, %v1918
    %v1920 = vmul.f32 %v1841, %v1915
    %v1921 = vmul.f32 %v1842, %v1919
    %v1923 = vlaneseq
    %v1924 = vshrl.u32 %v1923, 7
    %v1925 = vsub.s32 2, %v1924
    %v1926 = vrot.slane %v1911, %v1925
    %v1927 = vlaneseq
    %v1928 = vshrl.u32 %v1927, 7
    %v1929 = vsub.s32 6, %v1928
    %v1930 = vrot.slane %v1911, %v1929
    %v1933 = vlaneseq
    %v1934 = vshrl.u32 %v1933, 7
    %v1935 = vsub.s32 2, %v1934
    %v1936 = vrot.slane %v1926, %v1935
    %v1937 = vlaneseq
    %v1938 = vshrl.u32 %v1937, 7
    %v1939 = vsub.s32 2, %v1938
    %v1940 = vrot.slane %v1930, %v1939
    %v1941 = vadd.f32 %v1920, %v1936
    %v1942 = vadd.f32 %v1921, %v1940
    %v1943 = vrot.slane %v1941, 1
    %v1944 = vrot.slane %v1942, 1
    %v1945 = vmax.f32 %v1941, %v1943
    %v1946 = vmax.f32 %v1942, %v1944
    %v1947 = vld [vmem:[%s3] sm:$0x3]
    %v1948 = vpack.c.bf16 %v1945, %v1945
    %v1949 = vpack.c.bf16 %v1946, %v1946
    %vm1950 = vcmask 64512
    %v1952 = vsel %vm1950, %v1947, 0
    %vm1954 = vcmask 1043456
    %v1956 = vsel %vm1954, %v1948, 0
    %v1959 = vsel %vm1954, %v1949, 0
    %1961 = vmatprep.subr.bf16.mxu0 %v1959
    %1962 = vmatpush1.bf16.msra.mxu0 %v1956
    %1963 = vmatprep.subr.bf16.mxu0 0
    %1964 = vmatpush1.bf16.msra.mxu0 0
    %1965 = vmatprep.subr.bf16.mxu0 0
    %1966 = vmatpush1.bf16.msra.mxu0 0
    %1967 = vmatprep.subr.bf16.mxu0 0
    %1968 = vmatpush1.bf16.msra.mxu0 0
    %1969 = vmatprep.subr.bf16.mxu0 0
    %1970 = vmatpush1.bf16.msra.mxu0 0
    %1971 = vmatprep.subr.bf16.mxu0 0
    %1972 = vmatpush1.bf16.msra.mxu0 0
    %1973 = vmatprep.subr.bf16.mxu0 0
    %1974 = vmatpush1.bf16.msra.mxu0 0
    %1975 = vmatprep.subr.bf16.mxu0 0
    %1976 = vmatpush1.bf16.msra.mxu0 0
    %1977 = vmatprep.subr.bf16.mxu0 0
    %1978 = vmatpush1.bf16.msra.mxu0 0
    %1979 = vmatprep.subr.bf16.mxu0 0
    %1980 = vmatpush1.bf16.msra.mxu0 0
    %1981 = vmatprep.subr.bf16.mxu0 0
    %1982 = vmatpush1.bf16.msra.mxu0 0
    %1983 = vmatprep.subr.bf16.mxu0 0
    %1984 = vmatpush1.bf16.msra.mxu0 0
    %1985 = vmatprep.subr.bf16.mxu0 0
    %1986 = vmatpush1.bf16.msra.mxu0 0
    %1987 = vmatprep.subr.bf16.mxu0 0
    %1988 = vmatpush1.bf16.msra.mxu0 0
    %1989 = vmatprep.subr.bf16.mxu0 0
    %1990 = vmatpush1.bf16.msra.mxu0 0
    %1991 = vmatprep.subr.bf16.mxu0 0
    %1992 = vmatpush1.bf16.msra.mxu0 0
    %1993 = vmatprep.mubr.bf16.mxu0 0
    %1994 = vmatmul.mubr.bf16.gmra.mrb[0].mxu0 %v1952
    %v1995 = vpop.f32.mrb[0].mxu0
    %v1996 = vadd.f32 0.0, %v1995
    %v1997 = vpop.f32.mrb[0].mxu0
    %v1998 = vadd.f32 0.0, %v1997
    %v1999 = vpop.f32.mrb[0].mxu0
    %v2000 = vpop.f32.mrb[0].mxu0
    %2001 = vdwg.mxu0
    %2002 = vrot.lane.b32.xlu0 %v1996, 64
    %v2003 = vpop.permute.xlu0 %2002
    %2004 = vrot.lane.b32.xlu0 %v1998, 64
    %v2005 = vpop.permute.xlu0 %2004
    %v2006 = vsel %vm311, %v2003, %v2005
    %v2007 = vsel %vm311, %v2005, %v2003
    %v2008 = vmax.f32 %v1996, %v2006
    %v2009 = vmax.f32 %v1998, %v2007
    %v2010 = vpack.c.bf16 %v2008, %v2008
    %v2011 = vpack.c.bf16 %v2009, %v2009
    %s2012 = scalar_lea.vmem %s2, 256
    %v2013 = vld [vmem:[%s2012] sm:$0xf]
    %v2014 = vld [vmem:[%s2012 + $0x4] sm:$0xf]
    %v2015 = vld [vmem:[%s2012 + $0x8] sm:$0xf]
    %v2016 = vld [vmem:[%s2012 + $0xc] sm:$0xf]
    %v2017 = vld [vmem:[%s2012 + $0x10] sm:$0xf]
    %v2018 = vld [vmem:[%s2012 + $0x14] sm:$0xf]
    %v2019 = vld [vmem:[%s2012 + $0x18] sm:$0xf]
    %v2020 = vld [vmem:[%s2012 + $0x1c] sm:$0xf]
    %v2021 = vld [vmem:[%s2012 + $0x20] sm:$0xf]
    %v2022 = vld [vmem:[%s2012 + $0x24] sm:$0xf]
    %v2023 = vld [vmem:[%s2012 + $0x28] sm:$0xf]
    %v2024 = vld [vmem:[%s2012 + $0x2c] sm:$0xf]
    %v2025 = vld [vmem:[%s2012 + $0x30] sm:$0xf]
    %v2026 = vld [vmem:[%s2012 + $0x34] sm:$0xf]
    %v2027 = vld [vmem:[%s2012 + $0x38] sm:$0xf]
    %v2028 = vld [vmem:[%s2012 + $0x3c] sm:$0xf]
    %v2029 = vld [vmem:[%s2012 + $0x40] sm:$0xf]
    %v2030 = vld [vmem:[%s2012 + $0x44] sm:$0xf]
    %v2031 = vld [vmem:[%s2012 + $0x48] sm:$0xf]
    %v2032 = vld [vmem:[%s2012 + $0x4c] sm:$0xf]
    %v2033 = vld [vmem:[%s2012 + $0x50] sm:$0xf]
    %v2034 = vld [vmem:[%s2012 + $0x54] sm:$0xf]
    %v2035 = vld [vmem:[%s2012 + $0x58] sm:$0xf]
    %v2036 = vld [vmem:[%s2012 + $0x5c] sm:$0xf]
    %v2037 = vld [vmem:[%s2012 + $0x60] sm:$0xf]
    %v2038 = vld [vmem:[%s2012 + $0x64] sm:$0xf]
    %v2039 = vld [vmem:[%s2012 + $0x68] sm:$0xf]
    %v2040 = vld [vmem:[%s2012 + $0x6c] sm:$0xf]
    %v2041 = vld [vmem:[%s2012 + $0x70] sm:$0xf]
    %v2042 = vld [vmem:[%s2012 + $0x74] sm:$0xf]
    %v2043 = vld [vmem:[%s2012 + $0x78] sm:$0xf]
    %v2044 = vld [vmem:[%s2012 + $0x7c] sm:$0xf]
    %v2077 = vunpack.c.l.b16 %v2013
    %v2078 = vunpack.c.l.b16 %v2014
    %v2079 = vunpack.c.l.b16 %v2015
    %v2080 = vunpack.c.l.b16 %v2016
    %v2081 = vunpack.c.l.b16 %v2017
    %v2082 = vunpack.c.l.b16 %v2018
    %v2083 = vunpack.c.l.b16 %v2019
    %v2084 = vunpack.c.l.b16 %v2020
    %v2085 = vunpack.c.l.b16 %v2021
    %v2086 = vunpack.c.l.b16 %v2022
    %v2087 = vunpack.c.l.b16 %v2023
    %v2088 = vunpack.c.l.b16 %v2024
    %v2089 = vunpack.c.l.b16 %v2025
    %v2090 = vunpack.c.l.b16 %v2026
    %v2091 = vunpack.c.l.b16 %v2027
    %v2092 = vunpack.c.l.b16 %v2028
    %v2093 = vunpack.c.l.b16 %v2029
    %v2094 = vunpack.c.l.b16 %v2030
    %v2095 = vunpack.c.l.b16 %v2031
    %v2096 = vunpack.c.l.b16 %v2032
    %v2097 = vunpack.c.l.b16 %v2033
    %v2098 = vunpack.c.l.b16 %v2034
    %v2099 = vunpack.c.l.b16 %v2035
    %v2100 = vunpack.c.l.b16 %v2036
    %v2101 = vunpack.c.l.b16 %v2037
    %v2102 = vunpack.c.l.b16 %v2038
    %v2103 = vunpack.c.l.b16 %v2039
    %v2104 = vunpack.c.l.b16 %v2040
    %v2105 = vunpack.c.l.b16 %v2041
    %v2106 = vunpack.c.l.b16 %v2042
    %v2107 = vunpack.c.l.b16 %v2043
    %v2108 = vunpack.c.l.b16 %v2044
    %v2109 = vpack.c.b16 %v2078, %v2077
    %v2110 = vpack.c.b16 %v2080, %v2079
    %v2111 = vpack.c.b16 %v2082, %v2081
    %v2112 = vpack.c.b16 %v2084, %v2083
    %v2113 = vpack.c.b16 %v2086, %v2085
    %v2114 = vpack.c.b16 %v2088, %v2087
    %v2115 = vpack.c.b16 %v2090, %v2089
    %v2116 = vpack.c.b16 %v2092, %v2091
    %v2117 = vpack.c.b16 %v2094, %v2093
    %v2118 = vpack.c.b16 %v2096, %v2095
    %v2119 = vpack.c.b16 %v2098, %v2097
    %v2120 = vpack.c.b16 %v2100, %v2099
    %v2121 = vpack.c.b16 %v2102, %v2101
    %v2122 = vpack.c.b16 %v2104, %v2103
    %v2123 = vpack.c.b16 %v2106, %v2105
    %v2124 = vpack.c.b16 %v2108, %v2107
    %2141 = vmatprep.subr.bf16.mxu0 0
    %2142 = vmatpush1.bf16.msra.mxu0 %v2109
    %2143 = vmatprep.subr.bf16.mxu0 0
    %2144 = vmatpush1.bf16.msra.mxu0 %v2110
    %2145 = vmatprep.subr.bf16.mxu0 0
    %2146 = vmatpush1.bf16.msra.mxu0 %v2111
    %2147 = vmatprep.subr.bf16.mxu0 0
    %2148 = vmatpush1.bf16.msra.mxu0 %v2112
    %2149 = vmatprep.subr.bf16.mxu0 0
    %2150 = vmatpush1.bf16.msra.mxu0 %v2113
    %2151 = vmatprep.subr.bf16.mxu0 0
    %2152 = vmatpush1.bf16.msra.mxu0 %v2114
    %2153 = vmatprep.subr.bf16.mxu0 0
    %2154 = vmatpush1.bf16.msra.mxu0 %v2115
    %2155 = vmatprep.subr.bf16.mxu0 0
    %2156 = vmatpush1.bf16.msra.mxu0 %v2116
    %2157 = vmatprep.subr.bf16.mxu0 0
    %2158 = vmatpush1.bf16.msra.mxu0 %v2117
    %2159 = vmatprep.subr.bf16.mxu0 0
    %2160 = vmatpush1.bf16.msra.mxu0 %v2118
    %2161 = vmatprep.subr.bf16.mxu0 0
    %2162 = vmatpush1.bf16.msra.mxu0 %v2119
    %2163 = vmatprep.subr.bf16.mxu0 0
    %2164 = vmatpush1.bf16.msra.mxu0 %v2120
    %2165 = vmatprep.subr.bf16.mxu0 0
    %2166 = vmatpush1.bf16.msra.mxu0 %v2121
    %2167 = vmatprep.subr.bf16.mxu0 0
    %2168 = vmatpush1.bf16.msra.mxu0 %v2122
    %2169 = vmatprep.subr.bf16.mxu0 0
    %2170 = vmatpush1.bf16.msra.mxu0 %v2123
    %2171 = vmatprep.subr.bf16.mxu0 0
    %2172 = vmatpush1.bf16.msra.mxu0 %v2124
    %2173 = vmatprep.mubr.bf16.mxu0 %v2011
    %2174 = vmatmul.mubr.bf16.gmra.mrb[0].mxu0 %v2010
    %v2175 = vpop.f32.mrb[0].mxu0
    %v2176 = vadd.f32 0.0, %v2175
    %v2177 = vpop.f32.mrb[0].mxu0
    %v2178 = vpop.f32.mrb[0].mxu0
    %v2179 = vpop.f32.mrb[0].mxu0
    %2180 = vdwg.mxu0
    %vm2181 = vcmask 1041408
    %v2182 = vsel %vm2181, %v2176, 0.0
    %v2183 = vrot.slane %v2182, 4
    %v2184 = vadd.f32 %v2182, %v2183
    %v2185 = vrot.slane %v2184, 2
    %v2186 = vadd.f32 %v2184, %v2185
    %v2187 = vrot.slane %v2186, 1
    %v2188 = vadd.f32 %v2186, %v2187
    %v2190 = vrot.slane %v2176, 2
    %v2192 = vsel %vm2181, %v2190, 0.0
    %v2193 = vrot.slane %v2192, 4
    %v2194 = vadd.f32 %v2192, %v2193
    %v2195 = vrot.slane %v2194, 2
    %v2196 = vadd.f32 %v2194, %v2195
    %v2197 = vrot.slane %v2196, 1
    %v2198 = vadd.f32 %v2196, %v2197
    %v2199 = vsel %vm284, %v2188, %v2198
    %2200 = vrot.lane.b32.xlu0 %v2199, 64
    %v2201 = vpop.permute.xlu0 %2200
    %v2202 = vadd.f32 %v2199, %v2201
    %v2203 = vmul.f32 %v2202, 0.25
    %vm2204 = vcmask 523264
    %v2205 = vsel %vm2204, %v2203, 1.0
    %v2206 = vld [vmem:[%s5] sm:$0xff]
    %v2207 = vld [vmem:[%s5 + $0x8] sm:$0xff]
    %v2208 = vld [vmem:[%s5 + $0x10] sm:$0xff]
    %v2209 = vld [vmem:[%s5 + $0x18] sm:$0xff]
    %v2210 = vld [vmem:[%s5 + $0x20] sm:$0xff]
    %v2211 = vld [vmem:[%s5 + $0x28] sm:$0xff]
    %v2212 = vld [vmem:[%s5 + $0x30] sm:$0xff]
    %v2213 = vld [vmem:[%s5 + $0x38] sm:$0xff]
    %v2214 = vld [vmem:[%s5 + $0x40] sm:$0x1]
    %vm2215 = vcmask 531456
    %v2217 = vsel %vm2215, %v2205, 0
    %v2220 = vsel %vm284, %v2214, 0
    %2222 = vmatprep.subr.mxu0 0.0
    %2223 = vmatpush1.msra.mxu0 %v2206
    %2224 = vmatprep.subr.mxu0 0.0
    %2225 = vmatpush1.msra.mxu0 %v2207
    %2226 = vmatprep.subr.mxu0 0.0
    %2227 = vmatpush1.msra.mxu0 %v2208
    %2228 = vmatprep.subr.mxu0 0.0
    %2229 = vmatpush1.msra.mxu0 %v2209
    %2230 = vmatprep.subr.mxu0 0.0
    %2231 = vmatpush1.msra.mxu0 %v2210
    %2232 = vmatprep.subr.mxu0 0.0
    %2233 = vmatpush1.msra.mxu0 %v2211
    %2234 = vmatprep.subr.mxu0 0.0
    %2235 = vmatpush1.msra.mxu0 %v2212
    %2236 = vmatprep.subr.mxu0 0.0
    %2237 = vmatpush1.msra.mxu0 %v2213
    %2238 = vmatprep.subr.mxu0 0.0
    %2239 = vmatpush1.msra.mxu0 %v2220
    %2240 = vmatprep.subr.mxu0 0.0
    %2241 = vmatpush1.msra.mxu0 0.0
    %2242 = vmatprep.subr.mxu0 0.0
    %2243 = vmatpush1.msra.mxu0 0.0
    %2244 = vmatprep.subr.mxu0 0.0
    %2245 = vmatpush1.msra.mxu0 0.0
    %2246 = vmatprep.subr.mxu0 0.0
    %2247 = vmatpush1.msra.mxu0 0.0
    %2248 = vmatprep.subr.mxu0 0.0
    %2249 = vmatpush1.msra.mxu0 0.0
    %2250 = vmatprep.subr.mxu0 0.0
    %2251 = vmatpush1.msra.mxu0 0.0
    %2252 = vmatprep.subr.mxu0 0.0
    %2253 = vmatpush1.msra.mxu0 0.0
    %2254 = vmatprep.subr.mxu0 0.0
    %2255 = vmatpush1.msra.mxu0 0.0
    %2256 = vmatprep.subr.mxu0 0.0
    %2257 = vmatpush1.msra.mxu0 0.0
    %2258 = vmatprep.subr.mxu0 0.0
    %2259 = vmatpush1.msra.mxu0 0.0
    %2260 = vmatprep.subr.mxu0 0.0
    %2261 = vmatpush1.msra.mxu0 0.0
    %2262 = vmatprep.subr.mxu0 0.0
    %2263 = vmatpush1.msra.mxu0 0.0
    %2264 = vmatprep.subr.mxu0 0.0
    %2265 = vmatpush1.msra.mxu0 0.0
    %2266 = vmatprep.subr.mxu0 0.0
    %2267 = vmatpush1.msra.mxu0 0.0
    %2268 = vmatprep.subr.mxu0 0.0
    %2269 = vmatpush1.msra.mxu0 0.0
    %2270 = vmatprep.subr.mxu0 0.0
    %2271 = vmatpush1.msra.mxu0 0.0
    %2272 = vmatprep.subr.mxu0 0.0
    %2273 = vmatpush1.msra.mxu0 0.0
    %2274 = vmatprep.subr.mxu0 0.0
    %2275 = vmatpush1.msra.mxu0 0.0
    %2276 = vmatprep.subr.mxu0 0.0
    %2277 = vmatpush1.msra.mxu0 0.0
    %2278 = vmatprep.subr.mxu0 0.0
    %2279 = vmatpush1.msra.mxu0 0.0
    %2280 = vmatprep.subr.mxu0 0.0
    %2281 = vmatpush1.msra.mxu0 0.0
    %2282 = vmatprep.subr.mxu0 0.0
    %2283 = vmatpush1.msra.mxu0 0.0
    %2284 = vmatprep.subr.mxu0 0.0
    %2285 = vmatpush1.msra.mxu0 0.0
    %2286 = vmatprep.mubr.f32.mxu0 0.0
    %2287 = vmatmul.mubr.f32.gmra.mrb[0].mxu0 %v2217
    %v2288 = vpop.f32.mrb[0].mxu0
    %v2289 = vadd.f32 0.0, %v2288
    %v2290 = vpop.f32.mrb[0].mxu0
    %2291 = vdwg.mxu0
    %vm2292 = vcmask 25600
    %v2293 = vsel %vm2292, %v2289, -inf
    %2294 = vmax.xlane.f32.xlu0 %v2293
    %v2295 = vpop.xlane.xlu0 %2294
    %v2296 = vsub.f32 %v2289, %v2295
    %v2297 = vmul.f32 %v2296, 1.442695
    %v2298 = vpow.pop %v2297
    %v2299 = vsel %vm2292, %v2298, 0.0
    %2300 = vadd.xlane.f32.xlu0 %v2299
    %v2301 = vpop.xlane.xlu0 %2300
    %v2302 = vlog2.pop %v2301
    %v2303 = vmul.f32 %v2302, 0.6931472
    %v2304 = vsub.f32 %v2296, %v2303
    %2305 = vst.msk [vmem:[#allocation2] sm:$0x3] %vm2292, %v2304
    // Predicated region
    $region26: #{forward.1} parent=1 // pred_check
      _
    $region27: #{forward.1} parent=1 // pred_check_branch
      %2307 = sbr.rel (0) target = $region29
    $region28: #{forward.1} parent=1 // pred_region
      %s2309 = ssub.s32 32, 32
      %2310 = vsyncadd [#allocation3], %s2309
      %s2312 = sshll.u32 [#allocation2], 4
      %s2313 = int_to_ptr.vmem [resolvable:$true] %s2312
      %2315 = dma.vmem_to_hbm [thread:$0]  %s2313, 32, %s6, [#allocation3]
    $region29: #{forward.1} parent=1 // pred_fallthru
      _
    // Predicated region
    $region30: #{forward.1} parent=1 // pred_check
      _
    $region31: #{forward.1} parent=1 // pred_check_branch
      %2317 = sbr.rel (0) target = $region33
    $region32: #{forward.1} parent=1 // pred_region
      %2318 = dma.done [#allocation3], 32
    $region33: #{forward.1} parent=1 // pred_fallthru
      _
    %2319 = vsyncpa [#allocation3], 1

</llo_original>
